<compile_context>
chip_gen: v7x
topology: tpu7x:2x2x1
jax: 0.10.0
libtpu: 0.0.40
codegen_flags: <defaults>
</compile_context>

<pallas_src>
import jax
import jax.numpy as jnp
from jax import lax
from jax.experimental import pallas as pl
from jax.experimental.pallas import tpu as pltpu


def make_lstm_kernel(num_layers, T, B, H, D):
    """Build a Pallas kernel computing the full LSTM stack + final (padded) Linear."""
    has_seq_scratch = num_layers > 1

    def kernel(*refs):
        # refs = (x_ref, [w_ih, w_hh, b] * num_layers, fc_w, fc_b, out_ref, gbuf[, seq_buf])
        x_ref = refs[0]
        idx = 1
        layer_refs = []
        for _ in range(num_layers):
            layer_refs.append((refs[idx], refs[idx + 1], refs[idx + 2]))
            idx += 3
        fc_w_ref = refs[idx]
        fc_b_ref = refs[idx + 1]
        out_ref = refs[idx + 2]
        gbuf = refs[idx + 3]                                   # (T, B, 4H) gate pre-activations
        seq_buf = refs[idx + 4] if has_seq_scratch else None   # (T, B, H) layer-output sequence

        h_last = jnp.zeros((B, H), jnp.float32)
        for l in range(num_layers):
            w_ih_ref, w_hh_ref, b_ref = layer_refs[l]
            w_hh = w_hh_ref[...]                               # (H, 4H)
            b = b_ref[...]                                     # (1, 4H) = b_ih + b_hh

            # --- Bulk input projection for the whole sequence: ONE MXU matmul, bias folded.
            # This fully consumes the previous layer's seq_buf, freeing it for in-place reuse.
            d_in = D if l == 0 else H
            in_seq = x_ref[...] if l == 0 else seq_buf[...]    # (T, B, d_in)
            gates_in = (jnp.dot(in_seq.reshape(T * B, d_in), w_ih_ref[...],
                                preferred_element_type=jnp.float32)
                        + b)                                   # (T*B, 4H)
            gbuf[...] = gates_in.reshape(T, B, 4 * H)

            write_seq = l < num_layers - 1

            def step(t, carry, w_hh=w_hh, write_seq=write_seq):
                h, c = carry
                # Only the recurrent matmul stays on the serial critical path.
                gates = gbuf[t] + jnp.dot(h, w_hh,
                                          preferred_element_type=jnp.float32)  # (B, 4H)
                # Packed nonlinearities over the full 128-lane vreg (tanh-only, no divide):
                #   sigmoid(x) = 0.5 * tanh(0.5 x) + 0.5
                sig = 0.5 * jnp.tanh(0.5 * gates) + 0.5
                th = jnp.tanh(gates)
                i = sig[:, 0 * H:1 * H]
                f = sig[:, 1 * H:2 * H]
                g = th[:, 2 * H:3 * H]
                o = sig[:, 3 * H:4 * H]
                c_new = f * c + i * g
                h_new = o * jnp.tanh(c_new)
                if write_seq:
                    seq_buf[t] = h_new                          # in-place reuse is safe (see above)
                return h_new, c_new

            h0 = jnp.zeros((B, H), jnp.float32)
            c0 = jnp.zeros((B, H), jnp.float32)
            h_last, _ = lax.fori_loop(0, T, step, (h0, c0), unroll=True)

        # Final Linear into a lane-dense (B, C_pad) slab; wrapper slices the real classes.
        logits = (jnp.dot(h_last, fc_w_ref[...],
                          preferred_element_type=jnp.float32)
                  + fc_b_ref[...])
        out_ref[...] = logits.astype(out_ref.dtype)

    return kernel, has_seq_scratch


def speaker_recognition_rnn(x, params, *, hidden_size, num_layers, num_classes):
    """x: (batch, seq, input_size) float32 — same as PyTorch batch_first input."""
    B, T, D = x.shape
    H = hidden_size
    B_pad = max(8, ((B + 7) // 8) * 8)                 # fill f32 sublanes, dense stores
    C_pad = ((num_classes + 127) // 128) * 128         # lane-dense FC output slab

    x_tm = jnp.transpose(x, (1, 0, 2)).astype(jnp.float32)         # time-major (T, B, D)
    if B_pad != B:
        x_tm = jnp.pad(x_tm, ((0, 0), (0, B_pad - B), (0, 0)))

    inputs = [x_tm]
    for l in range(num_layers):
        w_ih, w_hh, b_ih, b_hh = params["lstm"][l]
        inputs.append(jnp.transpose(w_ih).astype(jnp.float32))                 # (D_in, 4H)
        inputs.append(jnp.transpose(w_hh).astype(jnp.float32))                 # (H, 4H)
        inputs.append((b_ih + b_hh).reshape(1, 4 * H).astype(jnp.float32))     # (1, 4H)
    fc_w, fc_b = params["fc"]
    fc_w_p = jnp.zeros((H, C_pad), jnp.float32).at[:, :num_classes].set(
        jnp.transpose(fc_w).astype(jnp.float32))                               # (H, C_pad)
    fc_b_p = jnp.zeros((1, C_pad), jnp.float32).at[:, :num_classes].set(
        fc_b.astype(jnp.float32))                                              # (1, C_pad)
    inputs.append(fc_w_p)
    inputs.append(fc_b_p)

    kernel, has_seq_scratch = make_lstm_kernel(num_layers, T, B_pad, H, D)
    scratch_shapes = [pltpu.VMEM((T, B_pad, 4 * H), jnp.float32)]   # gate pre-activations
    if has_seq_scratch:
        scratch_shapes.append(pltpu.VMEM((T, B_pad, H), jnp.float32))  # layer-output sequence

    out = pl.pallas_call(
        kernel,
        out_shape=jax.ShapeDtypeStruct((B_pad, C_pad), jnp.float32),
        in_specs=[pl.BlockSpec(memory_space=pltpu.MemorySpace.VMEM)] * len(inputs),
        out_specs=pl.BlockSpec(memory_space=pltpu.MemorySpace.VMEM),
        scratch_shapes=scratch_shapes,
    )(*inputs)
    return out[:B, :num_classes]


def init_params(key, input_size, hidden_size, num_layers, num_classes):
    """Deterministic init mimicking PyTorch's U(-1/sqrt(H), 1/sqrt(H))."""
    H = hidden_size
    k = 1.0 / jnp.sqrt(jnp.float32(H))
    params = {"lstm": []}
    for l in range(num_layers):
        d_in = input_size if l == 0 else H
        key, k1, k2, k3, k4 = jax.random.split(key, 5)
        w_ih = jax.random.uniform(k1, (4 * H, d_in), jnp.float32, -k, k)
        w_hh = jax.random.uniform(k2, (4 * H, H), jnp.float32, -k, k)
        b_ih = jax.random.uniform(k3, (4 * H,), jnp.float32, -k, k)
        b_hh = jax.random.uniform(k4, (4 * H,), jnp.float32, -k, k)
        params["lstm"].append((w_ih, w_hh, b_ih, b_hh))
    key, k5, k6 = jax.random.split(key, 3)
    kf = 1.0 / jnp.sqrt(jnp.float32(H))
    fc_w = jax.random.uniform(k5, (num_classes, H), jnp.float32, -kf, kf)
    fc_b = jax.random.uniform(k6, (num_classes,), jnp.float32, -kf, kf)
    params["fc"] = (fc_w, fc_b)
    return params


def reference_forward(x, params, *, hidden_size, num_layers):
    """Pure-JAX reference matching PyTorch nn.LSTM + nn.Linear semantics."""
    B, T, _ = x.shape
    H = hidden_size
    seq = x
    for l in range(num_layers):
        w_ih, w_hh, b_ih, b_hh = params["lstm"][l]
        h = jnp.zeros((B, H), jnp.float32)
        c = jnp.zeros((B, H), jnp.float32)
        hs = []
        for t in range(T):
            gates = seq[:, t, :] @ w_ih.T + b_ih + h @ w_hh.T + b_hh
            i, f, g, o = jnp.split(gates, 4, axis=-1)
            i = jax.nn.sigmoid(i)
            f = jax.nn.sigmoid(f)
            g = jnp.tanh(g)
            o = jax.nn.sigmoid(o)
            c = f * c + i * g
            h = o * jnp.tanh(c)
            hs.append(h)
        seq = jnp.stack(hs, axis=1)
    fc_w, fc_b = params["fc"]
    return seq[:, -1, :] @ fc_w.T + fc_b


if __name__ == "__main__":
    # Small shapes consistent with the module: MFCC-like features.
    batch, seq_len, input_size = 2, 8, 16
    hidden_size, num_layers, num_classes = 32, 2, 4

    key = jax.random.PRNGKey(0)
    key, xk, pk = jax.random.split(key, 3)
    x = jax.random.normal(xk, (batch, seq_len, input_size), jnp.float32)
    params = init_params(pk, input_size, hidden_size, num_layers, num_classes)

    out = speaker_recognition_rnn(
        x, params,
        hidden_size=hidden_size, num_layers=num_layers, num_classes=num_classes)
    out = jax.block_until_ready(out)

    ref = reference_forward(x, params, hidden_size=hidden_size, num_layers=num_layers)
    assert out.shape == (batch, num_classes)
    assert jnp.allclose(out, ref, atol=1e-4, rtol=1e-4), (out, ref)

    print("KERNEL_OK")
</pallas_src>

<mosaic_0001>
module attributes {stable_mosaic.version = 11 : i64} {
  func.func @kernel(%arg0: memref<8x8x16xf32, #tpu.memory_space<vmem>>, %arg1: memref<16x128xf32, #tpu.memory_space<vmem>>, %arg2: memref<32x128xf32, #tpu.memory_space<vmem>>, %arg3: memref<1x128xf32, #tpu.memory_space<vmem>>, %arg4: memref<32x128xf32, #tpu.memory_space<vmem>>, %arg5: memref<32x128xf32, #tpu.memory_space<vmem>>, %arg6: memref<1x128xf32, #tpu.memory_space<vmem>>, %arg7: memref<32x128xf32, #tpu.memory_space<vmem>>, %arg8: memref<1x128xf32, #tpu.memory_space<vmem>>, %arg9: memref<8x128xf32, #tpu.memory_space<vmem>>, %arg10: memref<8x8x128xf32, #tpu.memory_space<vmem>>, %arg11: memref<8x8x32xf32, #tpu.memory_space<vmem>>) attributes {dimension_semantics = [], scalar_prefetch = 0 : i64, scratch_operands = 2 : i64, tpu.core_type = #tpu.core_type<tc>} {
    %c0 = arith.constant 0 : index
    %c0_0 = arith.constant 0 : index
    %0 = vector.load %arg2[%c0, %c0_0] : memref<32x128xf32, #tpu.memory_space<vmem>>, vector<32x128xf32>
    %c0_1 = arith.constant 0 : index
    %c0_2 = arith.constant 0 : index
    %1 = vector.load %arg3[%c0_1, %c0_2] : memref<1x128xf32, #tpu.memory_space<vmem>>, vector<1x128xf32>
    %c0_3 = arith.constant 0 : index
    %c0_4 = arith.constant 0 : index
    %c0_5 = arith.constant 0 : index
    %2 = vector.load %arg0[%c0_3, %c0_4, %c0_5] : memref<8x8x16xf32, #tpu.memory_space<vmem>>, vector<8x8x16xf32>
    %3 = vector.shape_cast %2 : vector<8x8x16xf32> to vector<64x16xf32>
    %c0_6 = arith.constant 0 : index
    %c0_7 = arith.constant 0 : index
    %4 = vector.load %arg1[%c0_6, %c0_7] : memref<16x128xf32, #tpu.memory_space<vmem>>, vector<16x128xf32>
    %cst = arith.constant dense<0.000000e+00> : vector<64x128xf32>
    %5 = tpu.matmul %3, %4, %cst {dimension_numbers = #tpu.dot_dimension_numbers<[1], [0], [0], [1], [0, 0, 1, 1], [], []>} : vector<64x16xf32>, vector<16x128xf32>, vector<64x128xf32> -> vector<64x128xf32>
    %6 = vector.broadcast %1 : vector<1x128xf32> to vector<64x128xf32>
    %7 = arith.addf %5, %6 : vector<64x128xf32>
    %8 = vector.shape_cast %7 : vector<64x128xf32> to vector<8x8x128xf32>
    %c0_8 = arith.constant 0 : index
    %c0_9 = arith.constant 0 : index
    %c0_10 = arith.constant 0 : index
    %9 = vector.load %arg10[%c0_8, %c0_9, %c0_10] : memref<8x8x128xf32, #tpu.memory_space<vmem>>, vector<8x8x128xf32>
    tpu.vector_store %arg10[%c0_8, %c0_9, %c0_10], %8 {strides = array<i32>} : memref<8x8x128xf32, #tpu.memory_space<vmem>>, vector<8x8x128xf32>,
    %cst_11 = arith.constant 0.000000e+00 : f32
    %10 = vector.broadcast %cst_11 : f32 to vector<8x32xf32>
    %cst_12 = arith.constant 0.000000e+00 : f32
    %11 = vector.broadcast %cst_12 : f32 to vector<8x32xf32>
    %c0_i32 = arith.constant 0 : i32
    %12 = arith.index_cast %c0_i32 : i32 to index
    %c0_13 = arith.constant 0 : index
    %c0_14 = arith.constant 0 : index
    %13 = vector.load %arg10[%12, %c0_13, %c0_14] : memref<8x8x128xf32, #tpu.memory_space<vmem>>, vector<1x8x128xf32>
    %14 = vector.shape_cast %13 : vector<1x8x128xf32> to vector<8x128xf32>
    %cst_15 = arith.constant dense<0.000000e+00> : vector<8x128xf32>
    %15 = tpu.matmul %10, %0, %cst_15 {dimension_numbers = #tpu.dot_dimension_numbers<[1], [0], [0], [1], [0, 0, 1, 1], [], []>} : vector<8x32xf32>, vector<32x128xf32>, vector<8x128xf32> -> vector<8x128xf32>
    %16 = arith.addf %14, %15 : vector<8x128xf32>
    %cst_16 = arith.constant 5.000000e-01 : f32
    %17 = vector.broadcast %cst_16 : f32 to vector<8x128xf32>
    %18 = arith.mulf %17, %16 : vector<8x128xf32>
    %19 = math.tanh %18 : vector<8x128xf32>
    %cst_17 = arith.constant 5.000000e-01 : f32
    %20 = vector.broadcast %cst_17 : f32 to vector<8x128xf32>
    %21 = arith.mulf %20, %19 : vector<8x128xf32>
    %cst_18 = arith.constant 5.000000e-01 : f32
    %22 = vector.broadcast %cst_18 : f32 to vector<8x128xf32>
    %23 = arith.addf %21, %22 : vector<8x128xf32>
    %24 = math.tanh %16 : vector<8x128xf32>
    %25 = vector.extract_strided_slice %23 {offsets = [0, 0], sizes = [8, 32], strides = [1, 1]} : vector<8x128xf32> to vector<8x32xf32>
    %26 = vector.extract_strided_slice %23 {offsets = [0, 32], sizes = [8, 32], strides = [1, 1]} : vector<8x128xf32> to vector<8x32xf32>
    %27 = vector.extract_strided_slice %24 {offsets = [0, 64], sizes = [8, 32], strides = [1, 1]} : vector<8x128xf32> to vector<8x32xf32>
    %28 = vector.extract_strided_slice %23 {offsets = [0, 96], sizes = [8, 32], strides = [1, 1]} : vector<8x128xf32> to vector<8x32xf32>
    %29 = arith.mulf %26, %11 : vector<8x32xf32>
    %30 = arith.mulf %25, %27 : vector<8x32xf32>
    %31 = arith.addf %29, %30 : vector<8x32xf32>
    %32 = math.tanh %31 : vector<8x32xf32>
    %33 = arith.mulf %28, %32 : vector<8x32xf32>
    %34 = arith.index_cast %c0_i32 : i32 to index
    %c0_19 = arith.constant 0 : index
    %c0_20 = arith.constant 0 : index
    %35 = vector.load %arg11[%34, %c0_19, %c0_20] : memref<8x8x32xf32, #tpu.memory_space<vmem>>, vector<1x8x32xf32>
    %36 = vector.shape_cast %35 : vector<1x8x32xf32> to vector<8x32xf32>
    %37 = vector.shape_cast %33 : vector<8x32xf32> to vector<1x8x32xf32>
    tpu.vector_store %arg11[%34, %c0_19, %c0_20], %37 {strides = array<i32>} : memref<8x8x32xf32, #tpu.memory_space<vmem>>, vector<1x8x32xf32>,
    %c1_i32 = arith.constant 1 : i32
    %38 = arith.index_cast %c1_i32 : i32 to index
    %c0_21 = arith.constant 0 : index
    %c0_22 = arith.constant 0 : index
    %39 = vector.load %arg10[%38, %c0_21, %c0_22] : memref<8x8x128xf32, #tpu.memory_space<vmem>>, vector<1x8x128xf32>
    %40 = vector.shape_cast %39 : vector<1x8x128xf32> to vector<8x128xf32>
    %cst_23 = arith.constant dense<0.000000e+00> : vector<8x128xf32>
    %41 = tpu.matmul %33, %0, %cst_23 {dimension_numbers = #tpu.dot_dimension_numbers<[1], [0], [0], [1], [0, 0, 1, 1], [], []>} : vector<8x32xf32>, vector<32x128xf32>, vector<8x128xf32> -> vector<8x128xf32>
    %42 = arith.addf %40, %41 : vector<8x128xf32>
    %cst_24 = arith.constant 5.000000e-01 : f32
    %43 = vector.broadcast %cst_24 : f32 to vector<8x128xf32>
    %44 = arith.mulf %43, %42 : vector<8x128xf32>
    %45 = math.tanh %44 : vector<8x128xf32>
    %cst_25 = arith.constant 5.000000e-01 : f32
    %46 = vector.broadcast %cst_25 : f32 to vector<8x128xf32>
    %47 = arith.mulf %46, %45 : vector<8x128xf32>
    %cst_26 = arith.constant 5.000000e-01 : f32
    %48 = vector.broadcast %cst_26 : f32 to vector<8x128xf32>
    %49 = arith.addf %47, %48 : vector<8x128xf32>
    %50 = math.tanh %42 : vector<8x128xf32>
    %51 = vector.extract_strided_slice %49 {offsets = [0, 0], sizes = [8, 32], strides = [1, 1]} : vector<8x128xf32> to vector<8x32xf32>
    %52 = vector.extract_strided_slice %49 {offsets = [0, 32], sizes = [8, 32], strides = [1, 1]} : vector<8x128xf32> to vector<8x32xf32>
    %53 = vector.extract_strided_slice %50 {offsets = [0, 64], sizes = [8, 32], strides = [1, 1]} : vector<8x128xf32> to vector<8x32xf32>
    %54 = vector.extract_strided_slice %49 {offsets = [0, 96], sizes = [8, 32], strides = [1, 1]} : vector<8x128xf32> to vector<8x32xf32>
    %55 = arith.mulf %52, %31 : vector<8x32xf32>
    %56 = arith.mulf %51, %53 : vector<8x32xf32>
    %57 = arith.addf %55, %56 : vector<8x32xf32>
    %58 = math.tanh %57 : vector<8x32xf32>
    %59 = arith.mulf %54, %58 : vector<8x32xf32>
    %60 = arith.index_cast %c1_i32 : i32 to index
    %c0_27 = arith.constant 0 : index
    %c0_28 = arith.constant 0 : index
    %61 = vector.load %arg11[%60, %c0_27, %c0_28] : memref<8x8x32xf32, #tpu.memory_space<vmem>>, vector<1x8x32xf32>
    %62 = vector.shape_cast %61 : vector<1x8x32xf32> to vector<8x32xf32>
    %63 = vector.shape_cast %59 : vector<8x32xf32> to vector<1x8x32xf32>
    tpu.vector_store %arg11[%60, %c0_27, %c0_28], %63 {strides = array<i32>} : memref<8x8x32xf32, #tpu.memory_space<vmem>>, vector<1x8x32xf32>,
    %c2_i32 = arith.constant 2 : i32
    %64 = arith.index_cast %c2_i32 : i32 to index
    %c0_29 = arith.constant 0 : index
    %c0_30 = arith.constant 0 : index
    %65 = vector.load %arg10[%64, %c0_29, %c0_30] : memref<8x8x128xf32, #tpu.memory_space<vmem>>, vector<1x8x128xf32>
    %66 = vector.shape_cast %65 : vector<1x8x128xf32> to vector<8x128xf32>
    %cst_31 = arith.constant dense<0.000000e+00> : vector<8x128xf32>
    %67 = tpu.matmul %59, %0, %cst_31 {dimension_numbers = #tpu.dot_dimension_numbers<[1], [0], [0], [1], [0, 0, 1, 1], [], []>} : vector<8x32xf32>, vector<32x128xf32>, vector<8x128xf32> -> vector<8x128xf32>
    %68 = arith.addf %66, %67 : vector<8x128xf32>
    %cst_32 = arith.constant 5.000000e-01 : f32
    %69 = vector.broadcast %cst_32 : f32 to vector<8x128xf32>
    %70 = arith.mulf %69, %68 : vector<8x128xf32>
    %71 = math.tanh %70 : vector<8x128xf32>
    %cst_33 = arith.constant 5.000000e-01 : f32
    %72 = vector.broadcast %cst_33 : f32 to vector<8x128xf32>
    %73 = arith.mulf %72, %71 : vector<8x128xf32>
    %cst_34 = arith.constant 5.000000e-01 : f32
    %74 = vector.broadcast %cst_34 : f32 to vector<8x128xf32>
    %75 = arith.addf %73, %74 : vector<8x128xf32>
    %76 = math.tanh %68 : vector<8x128xf32>
    %77 = vector.extract_strided_slice %75 {offsets = [0, 0], sizes = [8, 32], strides = [1, 1]} : vector<8x128xf32> to vector<8x32xf32>
    %78 = vector.extract_strided_slice %75 {offsets = [0, 32], sizes = [8, 32], strides = [1, 1]} : vector<8x128xf32> to vector<8x32xf32>
    %79 = vector.extract_strided_slice %76 {offsets = [0, 64], sizes = [8, 32], strides = [1, 1]} : vector<8x128xf32> to vector<8x32xf32>
    %80 = vector.extract_strided_slice %75 {offsets = [0, 96], sizes = [8, 32], strides = [1, 1]} : vector<8x128xf32> to vector<8x32xf32>
    %81 = arith.mulf %78, %57 : vector<8x32xf32>
    %82 = arith.mulf %77, %79 : vector<8x32xf32>
    %83 = arith.addf %81, %82 : vector<8x32xf32>
    %84 = math.tanh %83 : vector<8x32xf32>
    %85 = arith.mulf %80, %84 : vector<8x32xf32>
    %86 = arith.index_cast %c2_i32 : i32 to index
    %c0_35 = arith.constant 0 : index
    %c0_36 = arith.constant 0 : index
    %87 = vector.load %arg11[%86, %c0_35, %c0_36] : memref<8x8x32xf32, #tpu.memory_space<vmem>>, vector<1x8x32xf32>
    %88 = vector.shape_cast %87 : vector<1x8x32xf32> to vector<8x32xf32>
    %89 = vector.shape_cast %85 : vector<8x32xf32> to vector<1x8x32xf32>
    tpu.vector_store %arg11[%86, %c0_35, %c0_36], %89 {strides = array<i32>} : memref<8x8x32xf32, #tpu.memory_space<vmem>>, vector<1x8x32xf32>,
    %c3_i32 = arith.constant 3 : i32
    %90 = arith.index_cast %c3_i32 : i32 to index
    %c0_37 = arith.constant 0 : index
    %c0_38 = arith.constant 0 : index
    %91 = vector.load %arg10[%90, %c0_37, %c0_38] : memref<8x8x128xf32, #tpu.memory_space<vmem>>, vector<1x8x128xf32>
    %92 = vector.shape_cast %91 : vector<1x8x128xf32> to vector<8x128xf32>
    %cst_39 = arith.constant dense<0.000000e+00> : vector<8x128xf32>
    %93 = tpu.matmul %85, %0, %cst_39 {dimension_numbers = #tpu.dot_dimension_numbers<[1], [0], [0], [1], [0, 0, 1, 1], [], []>} : vector<8x32xf32>, vector<32x128xf32>, vector<8x128xf32> -> vector<8x128xf32>
    %94 = arith.addf %92, %93 : vector<8x128xf32>
    %cst_40 = arith.constant 5.000000e-01 : f32
    %95 = vector.broadcast %cst_40 : f32 to vector<8x128xf32>
    %96 = arith.mulf %95, %94 : vector<8x128xf32>
    %97 = math.tanh %96 : vector<8x128xf32>
    %cst_41 = arith.constant 5.000000e-01 : f32
    %98 = vector.broadcast %cst_41 : f32 to vector<8x128xf32>
    %99 = arith.mulf %98, %97 : vector<8x128xf32>
    %cst_42 = arith.constant 5.000000e-01 : f32
    %100 = vector.broadcast %cst_42 : f32 to vector<8x128xf32>
    %101 = arith.addf %99, %100 : vector<8x128xf32>
    %102 = math.tanh %94 : vector<8x128xf32>
    %103 = vector.extract_strided_slice %101 {offsets = [0, 0], sizes = [8, 32], strides = [1, 1]} : vector<8x128xf32> to vector<8x32xf32>
    %104 = vector.extract_strided_slice %101 {offsets = [0, 32], sizes = [8, 32], strides = [1, 1]} : vector<8x128xf32> to vector<8x32xf32>
    %105 = vector.extract_strided_slice %102 {offsets = [0, 64], sizes = [8, 32], strides = [1, 1]} : vector<8x128xf32> to vector<8x32xf32>
    %106 = vector.extract_strided_slice %101 {offsets = [0, 96], sizes = [8, 32], strides = [1, 1]} : vector<8x128xf32> to vector<8x32xf32>
    %107 = arith.mulf %104, %83 : vector<8x32xf32>
    %108 = arith.mulf %103, %105 : vector<8x32xf32>
    %109 = arith.addf %107, %108 : vector<8x32xf32>
    %110 = math.tanh %109 : vector<8x32xf32>
    %111 = arith.mulf %106, %110 : vector<8x32xf32>
    %112 = arith.index_cast %c3_i32 : i32 to index
    %c0_43 = arith.constant 0 : index
    %c0_44 = arith.constant 0 : index
    %113 = vector.load %arg11[%112, %c0_43, %c0_44] : memref<8x8x32xf32, #tpu.memory_space<vmem>>, vector<1x8x32xf32>
    %114 = vector.shape_cast %113 : vector<1x8x32xf32> to vector<8x32xf32>
    %115 = vector.shape_cast %111 : vector<8x32xf32> to vector<1x8x32xf32>
    tpu.vector_store %arg11[%112, %c0_43, %c0_44], %115 {strides = array<i32>} : memref<8x8x32xf32, #tpu.memory_space<vmem>>, vector<1x8x32xf32>,
    %c4_i32 = arith.constant 4 : i32
    %116 = arith.index_cast %c4_i32 : i32 to index
    %c0_45 = arith.constant 0 : index
    %c0_46 = arith.constant 0 : index
    %117 = vector.load %arg10[%116, %c0_45, %c0_46] : memref<8x8x128xf32, #tpu.memory_space<vmem>>, vector<1x8x128xf32>
    %118 = vector.shape_cast %117 : vector<1x8x128xf32> to vector<8x128xf32>
    %cst_47 = arith.constant dense<0.000000e+00> : vector<8x128xf32>
    %119 = tpu.matmul %111, %0, %cst_47 {dimension_numbers = #tpu.dot_dimension_numbers<[1], [0], [0], [1], [0, 0, 1, 1], [], []>} : vector<8x32xf32>, vector<32x128xf32>, vector<8x128xf32> -> vector<8x128xf32>
    %120 = arith.addf %118, %119 : vector<8x128xf32>
    %cst_48 = arith.constant 5.000000e-01 : f32
    %121 = vector.broadcast %cst_48 : f32 to vector<8x128xf32>
    %122 = arith.mulf %121, %120 : vector<8x128xf32>
    %123 = math.tanh %122 : vector<8x128xf32>
    %cst_49 = arith.constant 5.000000e-01 : f32
    %124 = vector.broadcast %cst_49 : f32 to vector<8x128xf32>
    %125 = arith.mulf %124, %123 : vector<8x128xf32>
    %cst_50 = arith.constant 5.000000e-01 : f32
    %126 = vector.broadcast %cst_50 : f32 to vector<8x128xf32>
    %127 = arith.addf %125, %126 : vector<8x128xf32>
    %128 = math.tanh %120 : vector<8x128xf32>
    %129 = vector.extract_strided_slice %127 {offsets = [0, 0], sizes = [8, 32], strides = [1, 1]} : vector<8x128xf32> to vector<8x32xf32>
    %130 = vector.extract_strided_slice %127 {offsets = [0, 32], sizes = [8, 32], strides = [1, 1]} : vector<8x128xf32> to vector<8x32xf32>
    %131 = vector.extract_strided_slice %128 {offsets = [0, 64], sizes = [8, 32], strides = [1, 1]} : vector<8x128xf32> to vector<8x32xf32>
    %132 = vector.extract_strided_slice %127 {offsets = [0, 96], sizes = [8, 32], strides = [1, 1]} : vector<8x128xf32> to vector<8x32xf32>
    %133 = arith.mulf %130, %109 : vector<8x32xf32>
    %134 = arith.mulf %129, %131 : vector<8x32xf32>
    %135 = arith.addf %133, %134 : vector<8x32xf32>
    %136 = math.tanh %135 : vector<8x32xf32>
    %137 = arith.mulf %132, %136 : vector<8x32xf32>
    %138 = arith.index_cast %c4_i32 : i32 to index
    %c0_51 = arith.constant 0 : index
    %c0_52 = arith.constant 0 : index
    %139 = vector.load %arg11[%138, %c0_51, %c0_52] : memref<8x8x32xf32, #tpu.memory_space<vmem>>, vector<1x8x32xf32>
    %140 = vector.shape_cast %139 : vector<1x8x32xf32> to vector<8x32xf32>
    %141 = vector.shape_cast %137 : vector<8x32xf32> to vector<1x8x32xf32>
    tpu.vector_store %arg11[%138, %c0_51, %c0_52], %141 {strides = array<i32>} : memref<8x8x32xf32, #tpu.memory_space<vmem>>, vector<1x8x32xf32>,
    %c5_i32 = arith.constant 5 : i32
    %142 = arith.index_cast %c5_i32 : i32 to index
    %c0_53 = arith.constant 0 : index
    %c0_54 = arith.constant 0 : index
    %143 = vector.load %arg10[%142, %c0_53, %c0_54] : memref<8x8x128xf32, #tpu.memory_space<vmem>>, vector<1x8x128xf32>
    %144 = vector.shape_cast %143 : vector<1x8x128xf32> to vector<8x128xf32>
    %cst_55 = arith.constant dense<0.000000e+00> : vector<8x128xf32>
    %145 = tpu.matmul %137, %0, %cst_55 {dimension_numbers = #tpu.dot_dimension_numbers<[1], [0], [0], [1], [0, 0, 1, 1], [], []>} : vector<8x32xf32>, vector<32x128xf32>, vector<8x128xf32> -> vector<8x128xf32>
    %146 = arith.addf %144, %145 : vector<8x128xf32>
    %cst_56 = arith.constant 5.000000e-01 : f32
    %147 = vector.broadcast %cst_56 : f32 to vector<8x128xf32>
    %148 = arith.mulf %147, %146 : vector<8x128xf32>
    %149 = math.tanh %148 : vector<8x128xf32>
    %cst_57 = arith.constant 5.000000e-01 : f32
    %150 = vector.broadcast %cst_57 : f32 to vector<8x128xf32>
    %151 = arith.mulf %150, %149 : vector<8x128xf32>
    %cst_58 = arith.constant 5.000000e-01 : f32
    %152 = vector.broadcast %cst_58 : f32 to vector<8x128xf32>
    %153 = arith.addf %151, %152 : vector<8x128xf32>
    %154 = math.tanh %146 : vector<8x128xf32>
    %155 = vector.extract_strided_slice %153 {offsets = [0, 0], sizes = [8, 32], strides = [1, 1]} : vector<8x128xf32> to vector<8x32xf32>
    %156 = vector.extract_strided_slice %153 {offsets = [0, 32], sizes = [8, 32], strides = [1, 1]} : vector<8x128xf32> to vector<8x32xf32>
    %157 = vector.extract_strided_slice %154 {offsets = [0, 64], sizes = [8, 32], strides = [1, 1]} : vector<8x128xf32> to vector<8x32xf32>
    %158 = vector.extract_strided_slice %153 {offsets = [0, 96], sizes = [8, 32], strides = [1, 1]} : vector<8x128xf32> to vector<8x32xf32>
    %159 = arith.mulf %156, %135 : vector<8x32xf32>
    %160 = arith.mulf %155, %157 : vector<8x32xf32>
    %161 = arith.addf %159, %160 : vector<8x32xf32>
    %162 = math.tanh %161 : vector<8x32xf32>
    %163 = arith.mulf %158, %162 : vector<8x32xf32>
    %164 = arith.index_cast %c5_i32 : i32 to index
    %c0_59 = arith.constant 0 : index
    %c0_60 = arith.constant 0 : index
    %165 = vector.load %arg11[%164, %c0_59, %c0_60] : memref<8x8x32xf32, #tpu.memory_space<vmem>>, vector<1x8x32xf32>
    %166 = vector.shape_cast %165 : vector<1x8x32xf32> to vector<8x32xf32>
    %167 = vector.shape_cast %163 : vector<8x32xf32> to vector<1x8x32xf32>
    tpu.vector_store %arg11[%164, %c0_59, %c0_60], %167 {strides = array<i32>} : memref<8x8x32xf32, #tpu.memory_space<vmem>>, vector<1x8x32xf32>,
    %c6_i32 = arith.constant 6 : i32
    %168 = arith.index_cast %c6_i32 : i32 to index
    %c0_61 = arith.constant 0 : index
    %c0_62 = arith.constant 0 : index
    %169 = vector.load %arg10[%168, %c0_61, %c0_62] : memref<8x8x128xf32, #tpu.memory_space<vmem>>, vector<1x8x128xf32>
    %170 = vector.shape_cast %169 : vector<1x8x128xf32> to vector<8x128xf32>
    %cst_63 = arith.constant dense<0.000000e+00> : vector<8x128xf32>
    %171 = tpu.matmul %163, %0, %cst_63 {dimension_numbers = #tpu.dot_dimension_numbers<[1], [0], [0], [1], [0, 0, 1, 1], [], []>} : vector<8x32xf32>, vector<32x128xf32>, vector<8x128xf32> -> vector<8x128xf32>
    %172 = arith.addf %170, %171 : vector<8x128xf32>
    %cst_64 = arith.constant 5.000000e-01 : f32
    %173 = vector.broadcast %cst_64 : f32 to vector<8x128xf32>
    %174 = arith.mulf %173, %172 : vector<8x128xf32>
    %175 = math.tanh %174 : vector<8x128xf32>
    %cst_65 = arith.constant 5.000000e-01 : f32
    %176 = vector.broadcast %cst_65 : f32 to vector<8x128xf32>
    %177 = arith.mulf %176, %175 : vector<8x128xf32>
    %cst_66 = arith.constant 5.000000e-01 : f32
    %178 = vector.broadcast %cst_66 : f32 to vector<8x128xf32>
    %179 = arith.addf %177, %178 : vector<8x128xf32>
    %180 = math.tanh %172 : vector<8x128xf32>
    %181 = vector.extract_strided_slice %179 {offsets = [0, 0], sizes = [8, 32], strides = [1, 1]} : vector<8x128xf32> to vector<8x32xf32>
    %182 = vector.extract_strided_slice %179 {offsets = [0, 32], sizes = [8, 32], strides = [1, 1]} : vector<8x128xf32> to vector<8x32xf32>
    %183 = vector.extract_strided_slice %180 {offsets = [0, 64], sizes = [8, 32], strides = [1, 1]} : vector<8x128xf32> to vector<8x32xf32>
    %184 = vector.extract_strided_slice %179 {offsets = [0, 96], sizes = [8, 32], strides = [1, 1]} : vector<8x128xf32> to vector<8x32xf32>
    %185 = arith.mulf %182, %161 : vector<8x32xf32>
    %186 = arith.mulf %181, %183 : vector<8x32xf32>
    %187 = arith.addf %185, %186 : vector<8x32xf32>
    %188 = math.tanh %187 : vector<8x32xf32>
    %189 = arith.mulf %184, %188 : vector<8x32xf32>
    %190 = arith.index_cast %c6_i32 : i32 to index
    %c0_67 = arith.constant 0 : index
    %c0_68 = arith.constant 0 : index
    %191 = vector.load %arg11[%190, %c0_67, %c0_68] : memref<8x8x32xf32, #tpu.memory_space<vmem>>, vector<1x8x32xf32>
    %192 = vector.shape_cast %191 : vector<1x8x32xf32> to vector<8x32xf32>
    %193 = vector.shape_cast %189 : vector<8x32xf32> to vector<1x8x32xf32>
    tpu.vector_store %arg11[%190, %c0_67, %c0_68], %193 {strides = array<i32>} : memref<8x8x32xf32, #tpu.memory_space<vmem>>, vector<1x8x32xf32>,
    %c7_i32 = arith.constant 7 : i32
    %194 = arith.index_cast %c7_i32 : i32 to index
    %c0_69 = arith.constant 0 : index
    %c0_70 = arith.constant 0 : index
    %195 = vector.load %arg10[%194, %c0_69, %c0_70] : memref<8x8x128xf32, #tpu.memory_space<vmem>>, vector<1x8x128xf32>
    %196 = vector.shape_cast %195 : vector<1x8x128xf32> to vector<8x128xf32>
    %cst_71 = arith.constant dense<0.000000e+00> : vector<8x128xf32>
    %197 = tpu.matmul %189, %0, %cst_71 {dimension_numbers = #tpu.dot_dimension_numbers<[1], [0], [0], [1], [0, 0, 1, 1], [], []>} : vector<8x32xf32>, vector<32x128xf32>, vector<8x128xf32> -> vector<8x128xf32>
    %198 = arith.addf %196, %197 : vector<8x128xf32>
    %cst_72 = arith.constant 5.000000e-01 : f32
    %199 = vector.broadcast %cst_72 : f32 to vector<8x128xf32>
    %200 = arith.mulf %199, %198 : vector<8x128xf32>
    %201 = math.tanh %200 : vector<8x128xf32>
    %cst_73 = arith.constant 5.000000e-01 : f32
    %202 = vector.broadcast %cst_73 : f32 to vector<8x128xf32>
    %203 = arith.mulf %202, %201 : vector<8x128xf32>
    %cst_74 = arith.constant 5.000000e-01 : f32
    %204 = vector.broadcast %cst_74 : f32 to vector<8x128xf32>
    %205 = arith.addf %203, %204 : vector<8x128xf32>
    %206 = math.tanh %198 : vector<8x128xf32>
    %207 = vector.extract_strided_slice %205 {offsets = [0, 0], sizes = [8, 32], strides = [1, 1]} : vector<8x128xf32> to vector<8x32xf32>
    %208 = vector.extract_strided_slice %205 {offsets = [0, 32], sizes = [8, 32], strides = [1, 1]} : vector<8x128xf32> to vector<8x32xf32>
    %209 = vector.extract_strided_slice %206 {offsets = [0, 64], sizes = [8, 32], strides = [1, 1]} : vector<8x128xf32> to vector<8x32xf32>
    %210 = vector.extract_strided_slice %205 {offsets = [0, 96], sizes = [8, 32], strides = [1, 1]} : vector<8x128xf32> to vector<8x32xf32>
    %211 = arith.mulf %208, %187 : vector<8x32xf32>
    %212 = arith.mulf %207, %209 : vector<8x32xf32>
    %213 = arith.addf %211, %212 : vector<8x32xf32>
    %214 = math.tanh %213 : vector<8x32xf32>
    %215 = arith.mulf %210, %214 : vector<8x32xf32>
    %216 = arith.index_cast %c7_i32 : i32 to index
    %c0_75 = arith.constant 0 : index
    %c0_76 = arith.constant 0 : index
    %217 = vector.load %arg11[%216, %c0_75, %c0_76] : memref<8x8x32xf32, #tpu.memory_space<vmem>>, vector<1x8x32xf32>
    %218 = vector.shape_cast %217 : vector<1x8x32xf32> to vector<8x32xf32>
    %219 = vector.shape_cast %215 : vector<8x32xf32> to vector<1x8x32xf32>
    tpu.vector_store %arg11[%216, %c0_75, %c0_76], %219 {strides = array<i32>} : memref<8x8x32xf32, #tpu.memory_space<vmem>>, vector<1x8x32xf32>,
    %c8_i32 = arith.constant 8 : i32
    %c0_77 = arith.constant 0 : index
    %c0_78 = arith.constant 0 : index
    %220 = vector.load %arg5[%c0_77, %c0_78] : memref<32x128xf32, #tpu.memory_space<vmem>>, vector<32x128xf32>
    %c0_79 = arith.constant 0 : index
    %c0_80 = arith.constant 0 : index
    %221 = vector.load %arg6[%c0_79, %c0_80] : memref<1x128xf32, #tpu.memory_space<vmem>>, vector<1x128xf32>
    %c0_81 = arith.constant 0 : index
    %c0_82 = arith.constant 0 : index
    %c0_83 = arith.constant 0 : index
    %222 = vector.load %arg11[%c0_81, %c0_82, %c0_83] : memref<8x8x32xf32, #tpu.memory_space<vmem>>, vector<8x8x32xf32>
    %223 = vector.shape_cast %222 : vector<8x8x32xf32> to vector<64x32xf32>
    %c0_84 = arith.constant 0 : index
    %c0_85 = arith.constant 0 : index
    %224 = vector.load %arg4[%c0_84, %c0_85] : memref<32x128xf32, #tpu.memory_space<vmem>>, vector<32x128xf32>
    %cst_86 = arith.constant dense<0.000000e+00> : vector<64x128xf32>
    %225 = tpu.matmul %223, %224, %cst_86 {dimension_numbers = #tpu.dot_dimension_numbers<[1], [0], [0], [1], [0, 0, 1, 1], [], []>} : vector<64x32xf32>, vector<32x128xf32>, vector<64x128xf32> -> vector<64x128xf32>
    %226 = vector.broadcast %221 : vector<1x128xf32> to vector<64x128xf32>
    %227 = arith.addf %225, %226 : vector<64x128xf32>
    %228 = vector.shape_cast %227 : vector<64x128xf32> to vector<8x8x128xf32>
    %c0_87 = arith.constant 0 : index
    %c0_88 = arith.constant 0 : index
    %c0_89 = arith.constant 0 : index
    %229 = vector.load %arg10[%c0_87, %c0_88, %c0_89] : memref<8x8x128xf32, #tpu.memory_space<vmem>>, vector<8x8x128xf32>
    tpu.vector_store %arg10[%c0_87, %c0_88, %c0_89], %228 {strides = array<i32>} : memref<8x8x128xf32, #tpu.memory_space<vmem>>, vector<8x8x128xf32>,
    %cst_90 = arith.constant 0.000000e+00 : f32
    %230 = vector.broadcast %cst_90 : f32 to vector<8x32xf32>
    %cst_91 = arith.constant 0.000000e+00 : f32
    %231 = vector.broadcast %cst_91 : f32 to vector<8x32xf32>
    %c0_i32_92 = arith.constant 0 : i32
    %232 = arith.index_cast %c0_i32_92 : i32 to index
    %c0_93 = arith.constant 0 : index
    %c0_94 = arith.constant 0 : index
    %233 = vector.load %arg10[%232, %c0_93, %c0_94] : memref<8x8x128xf32, #tpu.memory_space<vmem>>, vector<1x8x128xf32>
    %234 = vector.shape_cast %233 : vector<1x8x128xf32> to vector<8x128xf32>
    %cst_95 = arith.constant dense<0.000000e+00> : vector<8x128xf32>
    %235 = tpu.matmul %230, %220, %cst_95 {dimension_numbers = #tpu.dot_dimension_numbers<[1], [0], [0], [1], [0, 0, 1, 1], [], []>} : vector<8x32xf32>, vector<32x128xf32>, vector<8x128xf32> -> vector<8x128xf32>
    %236 = arith.addf %234, %235 : vector<8x128xf32>
    %cst_96 = arith.constant 5.000000e-01 : f32
    %237 = vector.broadcast %cst_96 : f32 to vector<8x128xf32>
    %238 = arith.mulf %237, %236 : vector<8x128xf32>
    %239 = math.tanh %238 : vector<8x128xf32>
    %cst_97 = arith.constant 5.000000e-01 : f32
    %240 = vector.broadcast %cst_97 : f32 to vector<8x128xf32>
    %241 = arith.mulf %240, %239 : vector<8x128xf32>
    %cst_98 = arith.constant 5.000000e-01 : f32
    %242 = vector.broadcast %cst_98 : f32 to vector<8x128xf32>
    %243 = arith.addf %241, %242 : vector<8x128xf32>
    %244 = math.tanh %236 : vector<8x128xf32>
    %245 = vector.extract_strided_slice %243 {offsets = [0, 0], sizes = [8, 32], strides = [1, 1]} : vector<8x128xf32> to vector<8x32xf32>
    %246 = vector.extract_strided_slice %243 {offsets = [0, 32], sizes = [8, 32], strides = [1, 1]} : vector<8x128xf32> to vector<8x32xf32>
    %247 = vector.extract_strided_slice %244 {offsets = [0, 64], sizes = [8, 32], strides = [1, 1]} : vector<8x128xf32> to vector<8x32xf32>
    %248 = vector.extract_strided_slice %243 {offsets = [0, 96], sizes = [8, 32], strides = [1, 1]} : vector<8x128xf32> to vector<8x32xf32>
    %249 = arith.mulf %246, %231 : vector<8x32xf32>
    %250 = arith.mulf %245, %247 : vector<8x32xf32>
    %251 = arith.addf %249, %250 : vector<8x32xf32>
    %252 = math.tanh %251 : vector<8x32xf32>
    %253 = arith.mulf %248, %252 : vector<8x32xf32>
    %c1_i32_99 = arith.constant 1 : i32
    %254 = arith.index_cast %c1_i32_99 : i32 to index
    %c0_100 = arith.constant 0 : index
    %c0_101 = arith.constant 0 : index
    %255 = vector.load %arg10[%254, %c0_100, %c0_101] : memref<8x8x128xf32, #tpu.memory_space<vmem>>, vector<1x8x128xf32>
    %256 = vector.shape_cast %255 : vector<1x8x128xf32> to vector<8x128xf32>
    %cst_102 = arith.constant dense<0.000000e+00> : vector<8x128xf32>
    %257 = tpu.matmul %253, %220, %cst_102 {dimension_numbers = #tpu.dot_dimension_numbers<[1], [0], [0], [1], [0, 0, 1, 1], [], []>} : vector<8x32xf32>, vector<32x128xf32>, vector<8x128xf32> -> vector<8x128xf32>
    %258 = arith.addf %256, %257 : vector<8x128xf32>
    %cst_103 = arith.constant 5.000000e-01 : f32
    %259 = vector.broadcast %cst_103 : f32 to vector<8x128xf32>
    %260 = arith.mulf %259, %258 : vector<8x128xf32>
    %261 = math.tanh %260 : vector<8x128xf32>
    %cst_104 = arith.constant 5.000000e-01 : f32
    %262 = vector.broadcast %cst_104 : f32 to vector<8x128xf32>
    %263 = arith.mulf %262, %261 : vector<8x128xf32>
    %cst_105 = arith.constant 5.000000e-01 : f32
    %264 = vector.broadcast %cst_105 : f32 to vector<8x128xf32>
    %265 = arith.addf %263, %264 : vector<8x128xf32>
    %266 = math.tanh %258 : vector<8x128xf32>
    %267 = vector.extract_strided_slice %265 {offsets = [0, 0], sizes = [8, 32], strides = [1, 1]} : vector<8x128xf32> to vector<8x32xf32>
    %268 = vector.extract_strided_slice %265 {offsets = [0, 32], sizes = [8, 32], strides = [1, 1]} : vector<8x128xf32> to vector<8x32xf32>
    %269 = vector.extract_strided_slice %266 {offsets = [0, 64], sizes = [8, 32], strides = [1, 1]} : vector<8x128xf32> to vector<8x32xf32>
    %270 = vector.extract_strided_slice %265 {offsets = [0, 96], sizes = [8, 32], strides = [1, 1]} : vector<8x128xf32> to vector<8x32xf32>
    %271 = arith.mulf %268, %251 : vector<8x32xf32>
    %272 = arith.mulf %267, %269 : vector<8x32xf32>
    %273 = arith.addf %271, %272 : vector<8x32xf32>
    %274 = math.tanh %273 : vector<8x32xf32>
    %275 = arith.mulf %270, %274 : vector<8x32xf32>
    %c2_i32_106 = arith.constant 2 : i32
    %276 = arith.index_cast %c2_i32_106 : i32 to index
    %c0_107 = arith.constant 0 : index
    %c0_108 = arith.constant 0 : index
    %277 = vector.load %arg10[%276, %c0_107, %c0_108] : memref<8x8x128xf32, #tpu.memory_space<vmem>>, vector<1x8x128xf32>
    %278 = vector.shape_cast %277 : vector<1x8x128xf32> to vector<8x128xf32>
    %cst_109 = arith.constant dense<0.000000e+00> : vector<8x128xf32>
    %279 = tpu.matmul %275, %220, %cst_109 {dimension_numbers = #tpu.dot_dimension_numbers<[1], [0], [0], [1], [0, 0, 1, 1], [], []>} : vector<8x32xf32>, vector<32x128xf32>, vector<8x128xf32> -> vector<8x128xf32>
    %280 = arith.addf %278, %279 : vector<8x128xf32>
    %cst_110 = arith.constant 5.000000e-01 : f32
    %281 = vector.broadcast %cst_110 : f32 to vector<8x128xf32>
    %282 = arith.mulf %281, %280 : vector<8x128xf32>
    %283 = math.tanh %282 : vector<8x128xf32>
    %cst_111 = arith.constant 5.000000e-01 : f32
    %284 = vector.broadcast %cst_111 : f32 to vector<8x128xf32>
    %285 = arith.mulf %284, %283 : vector<8x128xf32>
    %cst_112 = arith.constant 5.000000e-01 : f32
    %286 = vector.broadcast %cst_112 : f32 to vector<8x128xf32>
    %287 = arith.addf %285, %286 : vector<8x128xf32>
    %288 = math.tanh %280 : vector<8x128xf32>
    %289 = vector.extract_strided_slice %287 {offsets = [0, 0], sizes = [8, 32], strides = [1, 1]} : vector<8x128xf32> to vector<8x32xf32>
    %290 = vector.extract_strided_slice %287 {offsets = [0, 32], sizes = [8, 32], strides = [1, 1]} : vector<8x128xf32> to vector<8x32xf32>
    %291 = vector.extract_strided_slice %288 {offsets = [0, 64], sizes = [8, 32], strides = [1, 1]} : vector<8x128xf32> to vector<8x32xf32>
    %292 = vector.extract_strided_slice %287 {offsets = [0, 96], sizes = [8, 32], strides = [1, 1]} : vector<8x128xf32> to vector<8x32xf32>
    %293 = arith.mulf %290, %273 : vector<8x32xf32>
    %294 = arith.mulf %289, %291 : vector<8x32xf32>
    %295 = arith.addf %293, %294 : vector<8x32xf32>
    %296 = math.tanh %295 : vector<8x32xf32>
    %297 = arith.mulf %292, %296 : vector<8x32xf32>
    %c3_i32_113 = arith.constant 3 : i32
    %298 = arith.index_cast %c3_i32_113 : i32 to index
    %c0_114 = arith.constant 0 : index
    %c0_115 = arith.constant 0 : index
    %299 = vector.load %arg10[%298, %c0_114, %c0_115] : memref<8x8x128xf32, #tpu.memory_space<vmem>>, vector<1x8x128xf32>
    %300 = vector.shape_cast %299 : vector<1x8x128xf32> to vector<8x128xf32>
    %cst_116 = arith.constant dense<0.000000e+00> : vector<8x128xf32>
    %301 = tpu.matmul %297, %220, %cst_116 {dimension_numbers = #tpu.dot_dimension_numbers<[1], [0], [0], [1], [0, 0, 1, 1], [], []>} : vector<8x32xf32>, vector<32x128xf32>, vector<8x128xf32> -> vector<8x128xf32>
    %302 = arith.addf %300, %301 : vector<8x128xf32>
    %cst_117 = arith.constant 5.000000e-01 : f32
    %303 = vector.broadcast %cst_117 : f32 to vector<8x128xf32>
    %304 = arith.mulf %303, %302 : vector<8x128xf32>
    %305 = math.tanh %304 : vector<8x128xf32>
    %cst_118 = arith.constant 5.000000e-01 : f32
    %306 = vector.broadcast %cst_118 : f32 to vector<8x128xf32>
    %307 = arith.mulf %306, %305 : vector<8x128xf32>
    %cst_119 = arith.constant 5.000000e-01 : f32
    %308 = vector.broadcast %cst_119 : f32 to vector<8x128xf32>
    %309 = arith.addf %307, %308 : vector<8x128xf32>
    %310 = math.tanh %302 : vector<8x128xf32>
    %311 = vector.extract_strided_slice %309 {offsets = [0, 0], sizes = [8, 32], strides = [1, 1]} : vector<8x128xf32> to vector<8x32xf32>
    %312 = vector.extract_strided_slice %309 {offsets = [0, 32], sizes = [8, 32], strides = [1, 1]} : vector<8x128xf32> to vector<8x32xf32>
    %313 = vector.extract_strided_slice %310 {offsets = [0, 64], sizes = [8, 32], strides = [1, 1]} : vector<8x128xf32> to vector<8x32xf32>
    %314 = vector.extract_strided_slice %309 {offsets = [0, 96], sizes = [8, 32], strides = [1, 1]} : vector<8x128xf32> to vector<8x32xf32>
    %315 = arith.mulf %312, %295 : vector<8x32xf32>
    %316 = arith.mulf %311, %313 : vector<8x32xf32>
    %317 = arith.addf %315, %316 : vector<8x32xf32>
    %318 = math.tanh %317 : vector<8x32xf32>
    %319 = arith.mulf %314, %318 : vector<8x32xf32>
    %c4_i32_120 = arith.constant 4 : i32
    %320 = arith.index_cast %c4_i32_120 : i32 to index
    %c0_121 = arith.constant 0 : index
    %c0_122 = arith.constant 0 : index
    %321 = vector.load %arg10[%320, %c0_121, %c0_122] : memref<8x8x128xf32, #tpu.memory_space<vmem>>, vector<1x8x128xf32>
    %322 = vector.shape_cast %321 : vector<1x8x128xf32> to vector<8x128xf32>
    %cst_123 = arith.constant dense<0.000000e+00> : vector<8x128xf32>
    %323 = tpu.matmul %319, %220, %cst_123 {dimension_numbers = #tpu.dot_dimension_numbers<[1], [0], [0], [1], [0, 0, 1, 1], [], []>} : vector<8x32xf32>, vector<32x128xf32>, vector<8x128xf32> -> vector<8x128xf32>
    %324 = arith.addf %322, %323 : vector<8x128xf32>
    %cst_124 = arith.constant 5.000000e-01 : f32
    %325 = vector.broadcast %cst_124 : f32 to vector<8x128xf32>
    %326 = arith.mulf %325, %324 : vector<8x128xf32>
    %327 = math.tanh %326 : vector<8x128xf32>
    %cst_125 = arith.constant 5.000000e-01 : f32
    %328 = vector.broadcast %cst_125 : f32 to vector<8x128xf32>
    %329 = arith.mulf %328, %327 : vector<8x128xf32>
    %cst_126 = arith.constant 5.000000e-01 : f32
    %330 = vector.broadcast %cst_126 : f32 to vector<8x128xf32>
    %331 = arith.addf %329, %330 : vector<8x128xf32>
    %332 = math.tanh %324 : vector<8x128xf32>
    %333 = vector.extract_strided_slice %331 {offsets = [0, 0], sizes = [8, 32], strides = [1, 1]} : vector<8x128xf32> to vector<8x32xf32>
    %334 = vector.extract_strided_slice %331 {offsets = [0, 32], sizes = [8, 32], strides = [1, 1]} : vector<8x128xf32> to vector<8x32xf32>
    %335 = vector.extract_strided_slice %332 {offsets = [0, 64], sizes = [8, 32], strides = [1, 1]} : vector<8x128xf32> to vector<8x32xf32>
    %336 = vector.extract_strided_slice %331 {offsets = [0, 96], sizes = [8, 32], strides = [1, 1]} : vector<8x128xf32> to vector<8x32xf32>
    %337 = arith.mulf %334, %317 : vector<8x32xf32>
    %338 = arith.mulf %333, %335 : vector<8x32xf32>
    %339 = arith.addf %337, %338 : vector<8x32xf32>
    %340 = math.tanh %339 : vector<8x32xf32>
    %341 = arith.mulf %336, %340 : vector<8x32xf32>
    %c5_i32_127 = arith.constant 5 : i32
    %342 = arith.index_cast %c5_i32_127 : i32 to index
    %c0_128 = arith.constant 0 : index
    %c0_129 = arith.constant 0 : index
    %343 = vector.load %arg10[%342, %c0_128, %c0_129] : memref<8x8x128xf32, #tpu.memory_space<vmem>>, vector<1x8x128xf32>
    %344 = vector.shape_cast %343 : vector<1x8x128xf32> to vector<8x128xf32>
    %cst_130 = arith.constant dense<0.000000e+00> : vector<8x128xf32>
    %345 = tpu.matmul %341, %220, %cst_130 {dimension_numbers = #tpu.dot_dimension_numbers<[1], [0], [0], [1], [0, 0, 1, 1], [], []>} : vector<8x32xf32>, vector<32x128xf32>, vector<8x128xf32> -> vector<8x128xf32>
    %346 = arith.addf %344, %345 : vector<8x128xf32>
    %cst_131 = arith.constant 5.000000e-01 : f32
    %347 = vector.broadcast %cst_131 : f32 to vector<8x128xf32>
    %348 = arith.mulf %347, %346 : vector<8x128xf32>
    %349 = math.tanh %348 : vector<8x128xf32>
    %cst_132 = arith.constant 5.000000e-01 : f32
    %350 = vector.broadcast %cst_132 : f32 to vector<8x128xf32>
    %351 = arith.mulf %350, %349 : vector<8x128xf32>
    %cst_133 = arith.constant 5.000000e-01 : f32
    %352 = vector.broadcast %cst_133 : f32 to vector<8x128xf32>
    %353 = arith.addf %351, %352 : vector<8x128xf32>
    %354 = math.tanh %346 : vector<8x128xf32>
    %355 = vector.extract_strided_slice %353 {offsets = [0, 0], sizes = [8, 32], strides = [1, 1]} : vector<8x128xf32> to vector<8x32xf32>
    %356 = vector.extract_strided_slice %353 {offsets = [0, 32], sizes = [8, 32], strides = [1, 1]} : vector<8x128xf32> to vector<8x32xf32>
    %357 = vector.extract_strided_slice %354 {offsets = [0, 64], sizes = [8, 32], strides = [1, 1]} : vector<8x128xf32> to vector<8x32xf32>
    %358 = vector.extract_strided_slice %353 {offsets = [0, 96], sizes = [8, 32], strides = [1, 1]} : vector<8x128xf32> to vector<8x32xf32>
    %359 = arith.mulf %356, %339 : vector<8x32xf32>
    %360 = arith.mulf %355, %357 : vector<8x32xf32>
    %361 = arith.addf %359, %360 : vector<8x32xf32>
    %362 = math.tanh %361 : vector<8x32xf32>
    %363 = arith.mulf %358, %362 : vector<8x32xf32>
    %c6_i32_134 = arith.constant 6 : i32
    %364 = arith.index_cast %c6_i32_134 : i32 to index
    %c0_135 = arith.constant 0 : index
    %c0_136 = arith.constant 0 : index
    %365 = vector.load %arg10[%364, %c0_135, %c0_136] : memref<8x8x128xf32, #tpu.memory_space<vmem>>, vector<1x8x128xf32>
    %366 = vector.shape_cast %365 : vector<1x8x128xf32> to vector<8x128xf32>
    %cst_137 = arith.constant dense<0.000000e+00> : vector<8x128xf32>
    %367 = tpu.matmul %363, %220, %cst_137 {dimension_numbers = #tpu.dot_dimension_numbers<[1], [0], [0], [1], [0, 0, 1, 1], [], []>} : vector<8x32xf32>, vector<32x128xf32>, vector<8x128xf32> -> vector<8x128xf32>
    %368 = arith.addf %366, %367 : vector<8x128xf32>
    %cst_138 = arith.constant 5.000000e-01 : f32
    %369 = vector.broadcast %cst_138 : f32 to vector<8x128xf32>
    %370 = arith.mulf %369, %368 : vector<8x128xf32>
    %371 = math.tanh %370 : vector<8x128xf32>
    %cst_139 = arith.constant 5.000000e-01 : f32
    %372 = vector.broadcast %cst_139 : f32 to vector<8x128xf32>
    %373 = arith.mulf %372, %371 : vector<8x128xf32>
    %cst_140 = arith.constant 5.000000e-01 : f32
    %374 = vector.broadcast %cst_140 : f32 to vector<8x128xf32>
    %375 = arith.addf %373, %374 : vector<8x128xf32>
    %376 = math.tanh %368 : vector<8x128xf32>
    %377 = vector.extract_strided_slice %375 {offsets = [0, 0], sizes = [8, 32], strides = [1, 1]} : vector<8x128xf32> to vector<8x32xf32>
    %378 = vector.extract_strided_slice %375 {offsets = [0, 32], sizes = [8, 32], strides = [1, 1]} : vector<8x128xf32> to vector<8x32xf32>
    %379 = vector.extract_strided_slice %376 {offsets = [0, 64], sizes = [8, 32], strides = [1, 1]} : vector<8x128xf32> to vector<8x32xf32>
    %380 = vector.extract_strided_slice %375 {offsets = [0, 96], sizes = [8, 32], strides = [1, 1]} : vector<8x128xf32> to vector<8x32xf32>
    %381 = arith.mulf %378, %361 : vector<8x32xf32>
    %382 = arith.mulf %377, %379 : vector<8x32xf32>
    %383 = arith.addf %381, %382 : vector<8x32xf32>
    %384 = math.tanh %383 : vector<8x32xf32>
    %385 = arith.mulf %380, %384 : vector<8x32xf32>
    %c7_i32_141 = arith.constant 7 : i32
    %386 = arith.index_cast %c7_i32_141 : i32 to index
    %c0_142 = arith.constant 0 : index
    %c0_143 = arith.constant 0 : index
    %387 = vector.load %arg10[%386, %c0_142, %c0_143] : memref<8x8x128xf32, #tpu.memory_space<vmem>>, vector<1x8x128xf32>
    %388 = vector.shape_cast %387 : vector<1x8x128xf32> to vector<8x128xf32>
    %cst_144 = arith.constant dense<0.000000e+00> : vector<8x128xf32>
    %389 = tpu.matmul %385, %220, %cst_144 {dimension_numbers = #tpu.dot_dimension_numbers<[1], [0], [0], [1], [0, 0, 1, 1], [], []>} : vector<8x32xf32>, vector<32x128xf32>, vector<8x128xf32> -> vector<8x128xf32>
    %390 = arith.addf %388, %389 : vector<8x128xf32>
    %cst_145 = arith.constant 5.000000e-01 : f32
    %391 = vector.broadcast %cst_145 : f32 to vector<8x128xf32>
    %392 = arith.mulf %391, %390 : vector<8x128xf32>
    %393 = math.tanh %392 : vector<8x128xf32>
    %cst_146 = arith.constant 5.000000e-01 : f32
    %394 = vector.broadcast %cst_146 : f32 to vector<8x128xf32>
    %395 = arith.mulf %394, %393 : vector<8x128xf32>
    %cst_147 = arith.constant 5.000000e-01 : f32
    %396 = vector.broadcast %cst_147 : f32 to vector<8x128xf32>
    %397 = arith.addf %395, %396 : vector<8x128xf32>
    %398 = math.tanh %390 : vector<8x128xf32>
    %399 = vector.extract_strided_slice %397 {offsets = [0, 0], sizes = [8, 32], strides = [1, 1]} : vector<8x128xf32> to vector<8x32xf32>
    %400 = vector.extract_strided_slice %397 {offsets = [0, 32], sizes = [8, 32], strides = [1, 1]} : vector<8x128xf32> to vector<8x32xf32>
    %401 = vector.extract_strided_slice %398 {offsets = [0, 64], sizes = [8, 32], strides = [1, 1]} : vector<8x128xf32> to vector<8x32xf32>
    %402 = vector.extract_strided_slice %397 {offsets = [0, 96], sizes = [8, 32], strides = [1, 1]} : vector<8x128xf32> to vector<8x32xf32>
    %403 = arith.mulf %400, %383 : vector<8x32xf32>
    %404 = arith.mulf %399, %401 : vector<8x32xf32>
    %405 = arith.addf %403, %404 : vector<8x32xf32>
    %406 = math.tanh %405 : vector<8x32xf32>
    %407 = arith.mulf %402, %406 : vector<8x32xf32>
    %c8_i32_148 = arith.constant 8 : i32
    %c0_149 = arith.constant 0 : index
    %c0_150 = arith.constant 0 : index
    %408 = vector.load %arg7[%c0_149, %c0_150] : memref<32x128xf32, #tpu.memory_space<vmem>>, vector<32x128xf32>
    %cst_151 = arith.constant dense<0.000000e+00> : vector<8x128xf32>
    %409 = tpu.matmul %407, %408, %cst_151 {dimension_numbers = #tpu.dot_dimension_numbers<[1], [0], [0], [1], [0, 0, 1, 1], [], []>} : vector<8x32xf32>, vector<32x128xf32>, vector<8x128xf32> -> vector<8x128xf32>
    %c0_152 = arith.constant 0 : index
    %c0_153 = arith.constant 0 : index
    %410 = vector.load %arg8[%c0_152, %c0_153] : memref<1x128xf32, #tpu.memory_space<vmem>>, vector<1x128xf32>
    %411 = vector.broadcast %410 : vector<1x128xf32> to vector<8x128xf32>
    %412 = arith.addf %409, %411 : vector<8x128xf32>
    %c0_154 = arith.constant 0 : index
    %c0_155 = arith.constant 0 : index
    %413 = vector.load %arg9[%c0_154, %c0_155] : memref<8x128xf32, #tpu.memory_space<vmem>>, vector<8x128xf32>
    tpu.vector_store %arg9[%c0_154, %c0_155], %412 {strides = array<i32>} : memref<8x128xf32, #tpu.memory_space<vmem>>, vector<8x128xf32>,
    return
  }
}

</mosaic_0001>

<llo_original>
// kernel: tpu_custom_call.1
$region0: #{tpu_custom_call.1}
  #allocation0 [shape = 'u32[]', space=smem, size = 0x4, offset = 0x4, fixed_abs, tag = 'smem constant byte address 0x4 - core index']
  #allocation1 [shape = 'u32[144,128]{1,0:T(1,128)}', space=vmem, size = 0x12000, scoped, tag = 'internal scratch']
  #allocation2 [shape = 'f32[8,8,128]{2,1,0:T(8,128)}', space=vmem, size = 0x8000, scoped, tag = 'scratch operand']
  #allocation3 [shape = 'f32[8,8,32]{2,1,0:T(8,128)}', space=vmem, size = 0x8000, scoped, tag = 'scratch operand']
  %s0 = inlined_call_operand.hbm [shape: f32[8,8,16], index: 0, kind: input, shape index: {}]
  %s1 = inlined_call_operand.hbm [shape: f32[16,128], index: 1, kind: input, shape index: {}]
  %s2 = inlined_call_operand.hbm [shape: f32[32,128], index: 2, kind: input, shape index: {}]
  %s3 = inlined_call_operand.vmem [shape: f32[1,128], index: 3, kind: input, shape index: {}]
  %s4 = inlined_call_operand.hbm [shape: f32[32,128], index: 4, kind: input, shape index: {}]
  %s5 = inlined_call_operand.hbm [shape: f32[32,128], index: 5, kind: input, shape index: {}]
  %s6 = inlined_call_operand.vmem [shape: f32[1,128], index: 6, kind: input, shape index: {}]
  %s7 = inlined_call_operand.hbm [shape: f32[32,128], index: 7, kind: input, shape index: {}]
  %s8 = inlined_call_operand.vmem [shape: f32[1,128], index: 8, kind: input, shape index: {}]
  %s9 = inlined_call_operand.hbm [shape: f32[8,128], index: 9, kind: output, shape index: {}]
  %s10 = sld [smem:[#allocation0]]
  $region70: #{tpu_custom_call.1} parent=0
    _
  %s12 = ssub.s32 1, %s10
  %s13 = scalar_select 0, %s12, %s10
  $region1: #{tpu_custom_call.1} parent=0
    #allocation4 [shape = 'u8[32768]{0}', space=vmem, size = 0x8000, scoped, tag = 'input window, operand 0, single buffered']
    #allocation5 [shape = 's32[1]{0}', space=sflag, size = 0x4, scoped, tag = 'scoped memory for tpu_custom_call.1']
    #allocation6 [shape = 's32[1]{0}', space=sflag, size = 0x4, scoped, tag = 'scoped memory for tpu_custom_call.1']
    #allocation7 [shape = 'u8[8192]{0}', space=vmem, size = 0x2000, scoped, tag = 'input window, operand 1, single buffered']
    #allocation8 [shape = 's32[1]{0}', space=sflag, size = 0x4, scoped, tag = 'scoped memory for tpu_custom_call.1']
    #allocation9 [shape = 'u8[16384]{0}', space=vmem, size = 0x4000, scoped, tag = 'input window, operand 2, single buffered']
    #allocation10 [shape = 'u8[16384]{0}', space=vmem, size = 0x4000, scoped, tag = 'input window, operand 4, single buffered']
    #allocation11 [shape = 's32[1]{0}', space=sflag, size = 0x4, scoped, tag = 'scoped memory for tpu_custom_call.1']
    #allocation12 [shape = 'u8[16384]{0}', space=vmem, size = 0x4000, scoped, tag = 'input window, operand 5, single buffered']
    #allocation13 [shape = 'u8[16384]{0}', space=vmem, size = 0x4000, scoped, tag = 'input window, operand 7, single buffered']
    #allocation14 [shape = 's32[1]{0}', space=sflag, size = 0x4, scoped, tag = 'scoped memory for tpu_custom_call.1']
    #allocation15 [shape = 'u8[4096]{0}', space=vmem, size = 0x1000, scoped, tag = 'output window, operand 0, single buffered']
    %14 = vsyncpa [#allocation5], 0
    %15 = vsyncpa [#allocation8], 0
    %16 = vsyncpa [#allocation11], 0
    %17 = vsyncpa [#allocation14], 0
    %18 = vsyncpa [#allocation6], 0
    // Predicated region
    $region2: #{tpu_custom_call.1} parent=1 // pred_check
      _
    $region3: #{tpu_custom_call.1} parent=1 // pred_check_branch
      %20 = sbr.rel (0) target = $region5
    $region4: #{tpu_custom_call.1} parent=1 // pred_region
      %s22 = ssub.s32 1024, 1024
      %23 = vsyncadd [#allocation5], %s22
      %s24 = sshll.u32 [#allocation4], 4
      %s25 = int_to_ptr.vmem [resolvable:$true] %s24
      %30 = dma.hbm_to_vmem [thread:$0]  %s0, 1024, %s25, [#allocation5], 128, 128, 8
    $region5: #{tpu_custom_call.1} parent=1 // pred_fallthru
      _
    // Predicated region
    $region6: #{tpu_custom_call.1} parent=1 // pred_check
      _
    $region7: #{tpu_custom_call.1} parent=1 // pred_check_branch
      %32 = sbr.rel (0) target = $region9
    $region8: #{tpu_custom_call.1} parent=1 // pred_region
      %s34 = ssub.s32 256, 256
      %35 = vsyncadd [#allocation8], %s34
      %s36 = sshll.u32 [#allocation7], 4
      %s37 = int_to_ptr.vmem [resolvable:$true] %s36
      %42 = dma.hbm_to_vmem [thread:$0]  %s1, 256, %s37, [#allocation8], 128, 128, 8
    $region9: #{tpu_custom_call.1} parent=1 // pred_fallthru
      _
    // Predicated region
    $region10: #{tpu_custom_call.1} parent=1 // pred_check
      _
    $region11: #{tpu_custom_call.1} parent=1 // pred_check_branch
      %44 = sbr.rel (0) target = $region13
    $region12: #{tpu_custom_call.1} parent=1 // pred_region
      %s46 = ssub.s32 512, 512
      %47 = vsyncadd [#allocation8], %s46
      %s48 = sshll.u32 [#allocation9], 4
      %s49 = int_to_ptr.vmem [resolvable:$true] %s48
      %54 = dma.hbm_to_vmem [thread:$0]  %s2, 512, %s49, [#allocation8], 128, 128, 8
    $region13: #{tpu_custom_call.1} parent=1 // pred_fallthru
      _
    // Predicated region
    $region14: #{tpu_custom_call.1} parent=1 // pred_check
      _
    $region15: #{tpu_custom_call.1} parent=1 // pred_check_branch
      %56 = sbr.rel (0) target = $region17
    $region16: #{tpu_custom_call.1} parent=1 // pred_region
      _
    $region17: #{tpu_custom_call.1} parent=1 // pred_fallthru
      _
    // Predicated region
    $region18: #{tpu_custom_call.1} parent=1 // pred_check
      _
    $region19: #{tpu_custom_call.1} parent=1 // pred_check_branch
      %58 = sbr.rel (0) target = $region21
    $region20: #{tpu_custom_call.1} parent=1 // pred_region
      %s60 = ssub.s32 512, 512
      %61 = vsyncadd [#allocation11], %s60
      %s62 = sshll.u32 [#allocation10], 4
      %s63 = int_to_ptr.vmem [resolvable:$true] %s62
      %68 = dma.hbm_to_vmem [thread:$0]  %s4, 512, %s63, [#allocation11], 128, 128, 8
    $region21: #{tpu_custom_call.1} parent=1 // pred_fallthru
      _
    // Predicated region
    $region22: #{tpu_custom_call.1} parent=1 // pred_check
      _
    $region23: #{tpu_custom_call.1} parent=1 // pred_check_branch
      %70 = sbr.rel (0) target = $region25
    $region24: #{tpu_custom_call.1} parent=1 // pred_region
      %s72 = ssub.s32 512, 512
      %73 = vsyncadd [#allocation11], %s72
      %s74 = sshll.u32 [#allocation12], 4
      %s75 = int_to_ptr.vmem [resolvable:$true] %s74
      %80 = dma.hbm_to_vmem [thread:$0]  %s5, 512, %s75, [#allocation11], 128, 128, 8
    $region25: #{tpu_custom_call.1} parent=1 // pred_fallthru
      _
    // Predicated region
    $region26: #{tpu_custom_call.1} parent=1 // pred_check
      _
    $region27: #{tpu_custom_call.1} parent=1 // pred_check_branch
      %82 = sbr.rel (0) target = $region29
    $region28: #{tpu_custom_call.1} parent=1 // pred_region
      _
    $region29: #{tpu_custom_call.1} parent=1 // pred_fallthru
      _
    // Predicated region
    $region30: #{tpu_custom_call.1} parent=1 // pred_check
      _
    $region31: #{tpu_custom_call.1} parent=1 // pred_check_branch
      %84 = sbr.rel (0) target = $region33
    $region32: #{tpu_custom_call.1} parent=1 // pred_region
      %s86 = ssub.s32 512, 512
      %87 = vsyncadd [#allocation14], %s86
      %s88 = sshll.u32 [#allocation13], 4
      %s89 = int_to_ptr.vmem [resolvable:$true] %s88
      %94 = dma.hbm_to_vmem [thread:$0]  %s7, 512, %s89, [#allocation14], 128, 128, 8
    $region33: #{tpu_custom_call.1} parent=1 // pred_fallthru
      _
    // Predicated region
    $region34: #{tpu_custom_call.1} parent=1 // pred_check
      _
    $region35: #{tpu_custom_call.1} parent=1 // pred_check_branch
      %96 = sbr.rel (0) target = $region37
    $region36: #{tpu_custom_call.1} parent=1 // pred_region
      _
    $region37: #{tpu_custom_call.1} parent=1 // pred_fallthru
      _
    // Predicated region
    $region38: #{tpu_custom_call.1} parent=1 // pred_check
      _
    $region39: #{tpu_custom_call.1} parent=1 // pred_check_branch
      %98 = sbr.rel (0) target = $region41
    $region40: #{tpu_custom_call.1} parent=1 // pred_region
      %99 = dma.done [#allocation5], 1024
    $region41: #{tpu_custom_call.1} parent=1 // pred_fallthru
      _
    // Predicated region
    $region42: #{tpu_custom_call.1} parent=1 // pred_check
      _
    $region43: #{tpu_custom_call.1} parent=1 // pred_check_branch
      %101 = sbr.rel (0) target = $region45
    $region44: #{tpu_custom_call.1} parent=1 // pred_region
      %102 = dma.done [#allocation8], 256
    $region45: #{tpu_custom_call.1} parent=1 // pred_fallthru
      _
    // Predicated region
    $region46: #{tpu_custom_call.1} parent=1 // pred_check
      _
    $region47: #{tpu_custom_call.1} parent=1 // pred_check_branch
      %104 = sbr.rel (0) target = $region49
    $region48: #{tpu_custom_call.1} parent=1 // pred_region
      %105 = dma.done [#allocation8], 512
    $region49: #{tpu_custom_call.1} parent=1 // pred_fallthru
      _
    // Predicated region
    $region50: #{tpu_custom_call.1} parent=1 // pred_check
      _
    $region51: #{tpu_custom_call.1} parent=1 // pred_check_branch
      %107 = sbr.rel (0) target = $region53
    $region52: #{tpu_custom_call.1} parent=1 // pred_region
      %108 = dma.done [#allocation11], 512
    $region53: #{tpu_custom_call.1} parent=1 // pred_fallthru
      _
    // Predicated region
    $region54: #{tpu_custom_call.1} parent=1 // pred_check
      _
    $region55: #{tpu_custom_call.1} parent=1 // pred_check_branch
      %110 = sbr.rel (0) target = $region57
    $region56: #{tpu_custom_call.1} parent=1 // pred_region
      %111 = dma.done [#allocation11], 512
    $region57: #{tpu_custom_call.1} parent=1 // pred_fallthru
      _
    // Predicated region
    $region58: #{tpu_custom_call.1} parent=1 // pred_check
      _
    $region59: #{tpu_custom_call.1} parent=1 // pred_check_branch
      %113 = sbr.rel (0) target = $region61
    $region60: #{tpu_custom_call.1} parent=1 // pred_region
      %114 = dma.done [#allocation14], 512
    $region61: #{tpu_custom_call.1} parent=1 // pred_fallthru
      _
    %v115 = vld [vmem:[#allocation9] sm:$0xff]
    %v116 = vld [vmem:[#allocation9 + $0x8] sm:$0xff]
    %v117 = vld [vmem:[#allocation9 + $0x10] sm:$0xff]
    %v118 = vld [vmem:[#allocation9 + $0x18] sm:$0xff]
    %v119 = vld [vmem:[%s3] sm:$0x1]
    %v120 = vld [vmem:[#allocation4] sm:$0xff]
    %v121 = vld [vmem:[#allocation4 + $0x8] sm:$0xff]
    %v122 = vld [vmem:[#allocation4 + $0x10] sm:$0xff]
    %v123 = vld [vmem:[#allocation4 + $0x18] sm:$0xff]
    %v124 = vld [vmem:[#allocation4 + $0x20] sm:$0xff]
    %v125 = vld [vmem:[#allocation4 + $0x28] sm:$0xff]
    %v126 = vld [vmem:[#allocation4 + $0x30] sm:$0xff]
    %v127 = vld [vmem:[#allocation4 + $0x38] sm:$0xff]
    %v128 = vld [vmem:[#allocation7] sm:$0xff]
    %v129 = vld [vmem:[#allocation7 + $0x8] sm:$0xff]
    %v131 = vlaneseq
    %v132 = vshrl.u32 %v131, 7
    %v133 = vsub.s32 0, %v132
    %v134 = vrot.slane %v119, %v133
    %vm136 = vcmask 130048
    %v138 = vsel %vm136, %v120, 0
    %v141 = vsel %vm136, %v121, 0
    %v144 = vsel %vm136, %v122, 0
    %v147 = vsel %vm136, %v123, 0
    %v150 = vsel %vm136, %v124, 0
    %v153 = vsel %vm136, %v125, 0
    %v156 = vsel %vm136, %v126, 0
    %v159 = vsel %vm136, %v127, 0
    %161 = vmatprep.subr.mxu0 0.0
    %162 = vmatpush1.msra.mxu0 %v128
    %163 = vmatprep.subr.mxu0 0.0
    %164 = vmatpush1.msra.mxu0 %v129
    %165 = vmatprep.subr.mxu0 0.0
    %166 = vmatpush1.msra.mxu0 0.0
    %167 = vmatprep.subr.mxu0 0.0
    %168 = vmatpush1.msra.mxu0 0.0
    %169 = vmatprep.subr.mxu0 0.0
    %170 = vmatpush1.msra.mxu0 0.0
    %171 = vmatprep.subr.mxu0 0.0
    %172 = vmatpush1.msra.mxu0 0.0
    %173 = vmatprep.subr.mxu0 0.0
    %174 = vmatpush1.msra.mxu0 0.0
    %175 = vmatprep.subr.mxu0 0.0
    %176 = vmatpush1.msra.mxu0 0.0
    %177 = vmatprep.subr.mxu0 0.0
    %178 = vmatpush1.msra.mxu0 0.0
    %179 = vmatprep.subr.mxu0 0.0
    %180 = vmatpush1.msra.mxu0 0.0
    %181 = vmatprep.subr.mxu0 0.0
    %182 = vmatpush1.msra.mxu0 0.0
    %183 = vmatprep.subr.mxu0 0.0
    %184 = vmatpush1.msra.mxu0 0.0
    %185 = vmatprep.subr.mxu0 0.0
    %186 = vmatpush1.msra.mxu0 0.0
    %187 = vmatprep.subr.mxu0 0.0
    %188 = vmatpush1.msra.mxu0 0.0
    %189 = vmatprep.subr.mxu0 0.0
    %190 = vmatpush1.msra.mxu0 0.0
    %191 = vmatprep.subr.mxu0 0.0
    %192 = vmatpush1.msra.mxu0 0.0
    %193 = vmatprep.subr.mxu0 0.0
    %194 = vmatpush1.msra.mxu0 0.0
    %195 = vmatprep.subr.mxu0 0.0
    %196 = vmatpush1.msra.mxu0 0.0
    %197 = vmatprep.subr.mxu0 0.0
    %198 = vmatpush1.msra.mxu0 0.0
    %199 = vmatprep.subr.mxu0 0.0
    %200 = vmatpush1.msra.mxu0 0.0
    %201 = vmatprep.subr.mxu0 0.0
    %202 = vmatpush1.msra.mxu0 0.0
    %203 = vmatprep.subr.mxu0 0.0
    %204 = vmatpush1.msra.mxu0 0.0
    %205 = vmatprep.subr.mxu0 0.0
    %206 = vmatpush1.msra.mxu0 0.0
    %207 = vmatprep.subr.mxu0 0.0
    %208 = vmatpush1.msra.mxu0 0.0
    %209 = vmatprep.subr.mxu0 0.0
    %210 = vmatpush1.msra.mxu0 0.0
    %211 = vmatprep.subr.mxu0 0.0
    %212 = vmatpush1.msra.mxu0 0.0
    %213 = vmatprep.subr.mxu0 0.0
    %214 = vmatpush1.msra.mxu0 0.0
    %215 = vmatprep.subr.mxu0 0.0
    %216 = vmatpush1.msra.mxu0 0.0
    %217 = vmatprep.subr.mxu0 0.0
    %218 = vmatpush1.msra.mxu0 0.0
    %219 = vmatprep.subr.mxu0 0.0
    %220 = vmatpush1.msra.mxu0 0.0
    %221 = vmatprep.subr.mxu0 0.0
    %222 = vmatpush1.msra.mxu0 0.0
    %223 = vmatprep.subr.mxu0 0.0
    %224 = vmatpush1.msra.mxu0 0.0
    %225 = vmatprep.mubr.f32.mxu0 0.0
    %226 = vmatmul.mubr.f32.gmra.mrb[0].mxu0 %v138
    %v227 = vpop.f32.mrb[0].mxu0
    %v228 = vadd.f32 %v134, %v227
    %v229 = vpop.f32.mrb[0].mxu0
    %230 = vmatprep.mubr.f32.mxu0 0.0
    %231 = vmatmul.mubr.f32.gmra.mrb[0].mxu0 %v141
    %v232 = vpop.f32.mrb[0].mxu0
    %v233 = vadd.f32 %v134, %v232
    %v234 = vpop.f32.mrb[0].mxu0
    %235 = vmatprep.mubr.f32.mxu0 0.0
    %236 = vmatmul.mubr.f32.gmra.mrb[0].mxu0 %v144
    %v237 = vpop.f32.mrb[0].mxu0
    %v238 = vadd.f32 %v134, %v237
    %v239 = vpop.f32.mrb[0].mxu0
    %240 = vmatprep.mubr.f32.mxu0 0.0
    %241 = vmatmul.mubr.f32.gmra.mrb[0].mxu0 %v147
    %v242 = vpop.f32.mrb[0].mxu0
    %v243 = vadd.f32 %v134, %v242
    %v244 = vpop.f32.mrb[0].mxu0
    %245 = vmatprep.mubr.f32.mxu0 0.0
    %246 = vmatmul.mubr.f32.gmra.mrb[0].mxu0 %v150
    %v247 = vpop.f32.mrb[0].mxu0
    %v248 = vadd.f32 %v134, %v247
    %v249 = vpop.f32.mrb[0].mxu0
    %250 = vmatprep.mubr.f32.mxu0 0.0
    %251 = vmatmul.mubr.f32.gmra.mrb[0].mxu0 %v153
    %v252 = vpop.f32.mrb[0].mxu0
    %v253 = vadd.f32 %v134, %v252
    %v254 = vpop.f32.mrb[0].mxu0
    %255 = vmatprep.mubr.f32.mxu0 0.0
    %256 = vmatmul.mubr.f32.gmra.mrb[0].mxu0 %v156
    %v257 = vpop.f32.mrb[0].mxu0
    %v258 = vadd.f32 %v134, %v257
    %v259 = vpop.f32.mrb[0].mxu0
    %260 = vmatprep.mubr.f32.mxu0 0.0
    %261 = vmatmul.mubr.f32.gmra.mrb[0].mxu0 %v159
    %v262 = vpop.f32.mrb[0].mxu0
    %v263 = vadd.f32 %v134, %v262
    %v264 = vpop.f32.mrb[0].mxu0
    %265 = vdwg.mxu0
    %266 = vst [vmem:[#allocation2] sm:$0xff] %v228
    %267 = vst [vmem:[#allocation2 + $0x8] sm:$0xff] %v233
    %268 = vst [vmem:[#allocation2 + $0x10] sm:$0xff] %v238
    %269 = vst [vmem:[#allocation2 + $0x18] sm:$0xff] %v243
    %270 = vst [vmem:[#allocation2 + $0x20] sm:$0xff] %v248
    %271 = vst [vmem:[#allocation2 + $0x28] sm:$0xff] %v253
    %272 = vst [vmem:[#allocation2 + $0x30] sm:$0xff] %v258
    %273 = vst [vmem:[#allocation2 + $0x38] sm:$0xff] %v263
    %v274 = vld [vmem:[#allocation2] sm:$0xff]
    %vm275 = vcmask 261120
    %v277 = vsel %vm275, 0.0, 0
    %279 = vmatprep.subr.mxu0 0.0
    %280 = vmatpush1.msra.mxu0 %v115
    %281 = vmatprep.subr.mxu0 0.0
    %282 = vmatpush1.msra.mxu0 %v116
    %283 = vmatprep.subr.mxu0 0.0
    %284 = vmatpush1.msra.mxu0 %v117
    %285 = vmatprep.subr.mxu0 0.0
    %286 = vmatpush1.msra.mxu0 %v118
    %287 = vmatprep.subr.mxu0 0.0
    %288 = vmatpush1.msra.mxu0 0.0
    %289 = vmatprep.subr.mxu0 0.0
    %290 = vmatpush1.msra.mxu0 0.0
    %291 = vmatprep.subr.mxu0 0.0
    %292 = vmatpush1.msra.mxu0 0.0
    %293 = vmatprep.subr.mxu0 0.0
    %294 = vmatpush1.msra.mxu0 0.0
    %295 = vmatprep.subr.mxu0 0.0
    %296 = vmatpush1.msra.mxu0 0.0
    %297 = vmatprep.subr.mxu0 0.0
    %298 = vmatpush1.msra.mxu0 0.0
    %299 = vmatprep.subr.mxu0 0.0
    %300 = vmatpush1.msra.mxu0 0.0
    %301 = vmatprep.subr.mxu0 0.0
    %302 = vmatpush1.msra.mxu0 0.0
    %303 = vmatprep.subr.mxu0 0.0
    %304 = vmatpush1.msra.mxu0 0.0
    %305 = vmatprep.subr.mxu0 0.0
    %306 = vmatpush1.msra.mxu0 0.0
    %307 = vmatprep.subr.mxu0 0.0
    %308 = vmatpush1.msra.mxu0 0.0
    %309 = vmatprep.subr.mxu0 0.0
    %310 = vmatpush1.msra.mxu0 0.0
    %311 = vmatprep.subr.mxu0 0.0
    %312 = vmatpush1.msra.mxu0 0.0
    %313 = vmatprep.subr.mxu0 0.0
    %314 = vmatpush1.msra.mxu0 0.0
    %315 = vmatprep.subr.mxu0 0.0
    %316 = vmatpush1.msra.mxu0 0.0
    %317 = vmatprep.subr.mxu0 0.0
    %318 = vmatpush1.msra.mxu0 0.0
    %319 = vmatprep.subr.mxu0 0.0
    %320 = vmatpush1.msra.mxu0 0.0
    %321 = vmatprep.subr.mxu0 0.0
    %322 = vmatpush1.msra.mxu0 0.0
    %323 = vmatprep.subr.mxu0 0.0
    %324 = vmatpush1.msra.mxu0 0.0
    %325 = vmatprep.subr.mxu0 0.0
    %326 = vmatpush1.msra.mxu0 0.0
    %327 = vmatprep.subr.mxu0 0.0
    %328 = vmatpush1.msra.mxu0 0.0
    %329 = vmatprep.subr.mxu0 0.0
    %330 = vmatpush1.msra.mxu0 0.0
    %331 = vmatprep.subr.mxu0 0.0
    %332 = vmatpush1.msra.mxu0 0.0
    %333 = vmatprep.subr.mxu0 0.0
    %334 = vmatpush1.msra.mxu0 0.0
    %335 = vmatprep.subr.mxu0 0.0
    %336 = vmatpush1.msra.mxu0 0.0
    %337 = vmatprep.subr.mxu0 0.0
    %338 = vmatpush1.msra.mxu0 0.0
    %339 = vmatprep.subr.mxu0 0.0
    %340 = vmatpush1.msra.mxu0 0.0
    %341 = vmatprep.subr.mxu0 0.0
    %342 = vmatpush1.msra.mxu0 0.0
    %343 = vmatprep.mubr.f32.mxu0 0.0
    %344 = vmatmul.mubr.f32.gmra.mrb[0].mxu0 %v277
    %v345 = vpop.f32.mrb[0].mxu0
    %v346 = vadd.f32 0.0, %v345
    %v347 = vpop.f32.mrb[0].mxu0
    %348 = vdwg.mxu0
    %v349 = vadd.f32 %v274, %v346
    %v350 = vmul.f32 %v349, 0.5
    %v351 = vtanh.pop %v350
    %v352 = vmul.f32 %v351, 0.5
    %v353 = vadd.f32 %v352, 0.5
    %v354 = vtanh.pop %v349
    %v355 = vmul.f32 %v353, 0.0
    %357 = vrot.lane.b32.xlu0 %v354, 64
    %v358 = vpop.permute.xlu0 %357
    %v360 = vmul.f32 %v353, %v358
    %362 = vrot.lane.b32.xlu0 %v360, 32
    %v363 = vpop.permute.xlu0 %362
    %v365 = vadd.f32 %v355, %v363
    %v366 = vtanh.pop %v365
    %368 = vrot.lane.b32.xlu0 %v366, 64
    %v369 = vpop.permute.xlu0 %368
    %v371 = vmul.f32 %v353, %v369
    %373 = vrot.lane.b32.xlu0 %v371, 32
    %v374 = vpop.permute.xlu0 %373
    %376 = vst.msk [vmem:[#allocation3] sm:$0xff] %vm275, %v374
    %s377 = scalar_lea.vmem [#allocation2], 8
    %v378 = vld [vmem:[%s377] sm:$0xff]
    %v379 = vsel %vm275, %v374, 0
    %381 = vmatprep.subr.mxu0 0.0
    %382 = vmatpush1.msra.mxu0 %v115
    %383 = vmatprep.subr.mxu0 0.0
    %384 = vmatpush1.msra.mxu0 %v116
    %385 = vmatprep.subr.mxu0 0.0
    %386 = vmatpush1.msra.mxu0 %v117
    %387 = vmatprep.subr.mxu0 0.0
    %388 = vmatpush1.msra.mxu0 %v118
    %389 = vmatprep.subr.mxu0 0.0
    %390 = vmatpush1.msra.mxu0 0.0
    %391 = vmatprep.subr.mxu0 0.0
    %392 = vmatpush1.msra.mxu0 0.0
    %393 = vmatprep.subr.mxu0 0.0
    %394 = vmatpush1.msra.mxu0 0.0
    %395 = vmatprep.subr.mxu0 0.0
    %396 = vmatpush1.msra.mxu0 0.0
    %397 = vmatprep.subr.mxu0 0.0
    %398 = vmatpush1.msra.mxu0 0.0
    %399 = vmatprep.subr.mxu0 0.0
    %400 = vmatpush1.msra.mxu0 0.0
    %401 = vmatprep.subr.mxu0 0.0
    %402 = vmatpush1.msra.mxu0 0.0
    %403 = vmatprep.subr.mxu0 0.0
    %404 = vmatpush1.msra.mxu0 0.0
    %405 = vmatprep.subr.mxu0 0.0
    %406 = vmatpush1.msra.mxu0 0.0
    %407 = vmatprep.subr.mxu0 0.0
    %408 = vmatpush1.msra.mxu0 0.0
    %409 = vmatprep.subr.mxu0 0.0
    %410 = vmatpush1.msra.mxu0 0.0
    %411 = vmatprep.subr.mxu0 0.0
    %412 = vmatpush1.msra.mxu0 0.0
    %413 = vmatprep.subr.mxu0 0.0
    %414 = vmatpush1.msra.mxu0 0.0
    %415 = vmatprep.subr.mxu0 0.0
    %416 = vmatpush1.msra.mxu0 0.0
    %417 = vmatprep.subr.mxu0 0.0
    %418 = vmatpush1.msra.mxu0 0.0
    %419 = vmatprep.subr.mxu0 0.0
    %420 = vmatpush1.msra.mxu0 0.0
    %421 = vmatprep.subr.mxu0 0.0
    %422 = vmatpush1.msra.mxu0 0.0
    %423 = vmatprep.subr.mxu0 0.0
    %424 = vmatpush1.msra.mxu0 0.0
    %425 = vmatprep.subr.mxu0 0.0
    %426 = vmatpush1.msra.mxu0 0.0
    %427 = vmatprep.subr.mxu0 0.0
    %428 = vmatpush1.msra.mxu0 0.0
    %429 = vmatprep.subr.mxu0 0.0
    %430 = vmatpush1.msra.mxu0 0.0
    %431 = vmatprep.subr.mxu0 0.0
    %432 = vmatpush1.msra.mxu0 0.0
    %433 = vmatprep.subr.mxu0 0.0
    %434 = vmatpush1.msra.mxu0 0.0
    %435 = vmatprep.subr.mxu0 0.0
    %436 = vmatpush1.msra.mxu0 0.0
    %437 = vmatprep.subr.mxu0 0.0
    %438 = vmatpush1.msra.mxu0 0.0
    %439 = vmatprep.subr.mxu0 0.0
    %440 = vmatpush1.msra.mxu0 0.0
    %441 = vmatprep.subr.mxu0 0.0
    %442 = vmatpush1.msra.mxu0 0.0
    %443 = vmatprep.subr.mxu0 0.0
    %444 = vmatpush1.msra.mxu0 0.0
    %445 = vmatprep.mubr.f32.mxu0 0.0
    %446 = vmatmul.mubr.f32.gmra.mrb[0].mxu0 %v379
    %v447 = vpop.f32.mrb[0].mxu0
    %v448 = vadd.f32 0.0, %v447
    %v449 = vpop.f32.mrb[0].mxu0
    %450 = vdwg.mxu0
    %v451 = vadd.f32 %v378, %v448
    %v452 = vmul.f32 %v451, 0.5
    %v453 = vtanh.pop %v452
    %v454 = vmul.f32 %v453, 0.5
    %v455 = vadd.f32 %v454, 0.5
    %v456 = vtanh.pop %v451
    %v457 = vmul.f32 %v455, %v365
    %459 = vrot.lane.b32.xlu0 %v456, 64
    %v460 = vpop.permute.xlu0 %459
    %v462 = vmul.f32 %v455, %v460
    %464 = vrot.lane.b32.xlu0 %v462, 32
    %v465 = vpop.permute.xlu0 %464
    %v467 = vadd.f32 %v457, %v465
    %v468 = vtanh.pop %v467
    %470 = vrot.lane.b32.xlu0 %v468, 64
    %v471 = vpop.permute.xlu0 %470
    %v473 = vmul.f32 %v455, %v471
    %475 = vrot.lane.b32.xlu0 %v473, 32
    %v476 = vpop.permute.xlu0 %475
    %s478 = scalar_lea.vmem [#allocation3], 8
    %479 = vst.msk [vmem:[%s478] sm:$0xff] %vm275, %v476
    %s480 = scalar_lea.vmem [#allocation2], 16
    %v481 = vld [vmem:[%s480] sm:$0xff]
    %v482 = vsel %vm275, %v476, 0
    %484 = vmatprep.subr.mxu0 0.0
    %485 = vmatpush1.msra.mxu0 %v115
    %486 = vmatprep.subr.mxu0 0.0
    %487 = vmatpush1.msra.mxu0 %v116
    %488 = vmatprep.subr.mxu0 0.0
    %489 = vmatpush1.msra.mxu0 %v117
    %490 = vmatprep.subr.mxu0 0.0
    %491 = vmatpush1.msra.mxu0 %v118
    %492 = vmatprep.subr.mxu0 0.0
    %493 = vmatpush1.msra.mxu0 0.0
    %494 = vmatprep.subr.mxu0 0.0
    %495 = vmatpush1.msra.mxu0 0.0
    %496 = vmatprep.subr.mxu0 0.0
    %497 = vmatpush1.msra.mxu0 0.0
    %498 = vmatprep.subr.mxu0 0.0
    %499 = vmatpush1.msra.mxu0 0.0
    %500 = vmatprep.subr.mxu0 0.0
    %501 = vmatpush1.msra.mxu0 0.0
    %502 = vmatprep.subr.mxu0 0.0
    %503 = vmatpush1.msra.mxu0 0.0
    %504 = vmatprep.subr.mxu0 0.0
    %505 = vmatpush1.msra.mxu0 0.0
    %506 = vmatprep.subr.mxu0 0.0
    %507 = vmatpush1.msra.mxu0 0.0
    %508 = vmatprep.subr.mxu0 0.0
    %509 = vmatpush1.msra.mxu0 0.0
    %510 = vmatprep.subr.mxu0 0.0
    %511 = vmatpush1.msra.mxu0 0.0
    %512 = vmatprep.subr.mxu0 0.0
    %513 = vmatpush1.msra.mxu0 0.0
    %514 = vmatprep.subr.mxu0 0.0
    %515 = vmatpush1.msra.mxu0 0.0
    %516 = vmatprep.subr.mxu0 0.0
    %517 = vmatpush1.msra.mxu0 0.0
    %518 = vmatprep.subr.mxu0 0.0
    %519 = vmatpush1.msra.mxu0 0.0
    %520 = vmatprep.subr.mxu0 0.0
    %521 = vmatpush1.msra.mxu0 0.0
    %522 = vmatprep.subr.mxu0 0.0
    %523 = vmatpush1.msra.mxu0 0.0
    %524 = vmatprep.subr.mxu0 0.0
    %525 = vmatpush1.msra.mxu0 0.0
    %526 = vmatprep.subr.mxu0 0.0
    %527 = vmatpush1.msra.mxu0 0.0
    %528 = vmatprep.subr.mxu0 0.0
    %529 = vmatpush1.msra.mxu0 0.0
    %530 = vmatprep.subr.mxu0 0.0
    %531 = vmatpush1.msra.mxu0 0.0
    %532 = vmatprep.subr.mxu0 0.0
    %533 = vmatpush1.msra.mxu0 0.0
    %534 = vmatprep.subr.mxu0 0.0
    %535 = vmatpush1.msra.mxu0 0.0
    %536 = vmatprep.subr.mxu0 0.0
    %537 = vmatpush1.msra.mxu0 0.0
    %538 = vmatprep.subr.mxu0 0.0
    %539 = vmatpush1.msra.mxu0 0.0
    %540 = vmatprep.subr.mxu0 0.0
    %541 = vmatpush1.msra.mxu0 0.0
    %542 = vmatprep.subr.mxu0 0.0
    %543 = vmatpush1.msra.mxu0 0.0
    %544 = vmatprep.subr.mxu0 0.0
    %545 = vmatpush1.msra.mxu0 0.0
    %546 = vmatprep.subr.mxu0 0.0
    %547 = vmatpush1.msra.mxu0 0.0
    %548 = vmatprep.mubr.f32.mxu0 0.0
    %549 = vmatmul.mubr.f32.gmra.mrb[0].mxu0 %v482
    %v550 = vpop.f32.mrb[0].mxu0
    %v551 = vadd.f32 0.0, %v550
    %v552 = vpop.f32.mrb[0].mxu0
    %553 = vdwg.mxu0
    %v554 = vadd.f32 %v481, %v551
    %v555 = vmul.f32 %v554, 0.5
    %v556 = vtanh.pop %v555
    %v557 = vmul.f32 %v556, 0.5
    %v558 = vadd.f32 %v557, 0.5
    %v559 = vtanh.pop %v554
    %v560 = vmul.f32 %v558, %v467
    %562 = vrot.lane.b32.xlu0 %v559, 64
    %v563 = vpop.permute.xlu0 %562
    %v565 = vmul.f32 %v558, %v563
    %567 = vrot.lane.b32.xlu0 %v565, 32
    %v568 = vpop.permute.xlu0 %567
    %v570 = vadd.f32 %v560, %v568
    %v571 = vtanh.pop %v570
    %573 = vrot.lane.b32.xlu0 %v571, 64
    %v574 = vpop.permute.xlu0 %573
    %v576 = vmul.f32 %v558, %v574
    %578 = vrot.lane.b32.xlu0 %v576, 32
    %v579 = vpop.permute.xlu0 %578
    %s581 = scalar_lea.vmem [#allocation3], 16
    %582 = vst.msk [vmem:[%s581] sm:$0xff] %vm275, %v579
    %s583 = scalar_lea.vmem [#allocation2], 24
    %v584 = vld [vmem:[%s583] sm:$0xff]
    %v585 = vsel %vm275, %v579, 0
    %587 = vmatprep.subr.mxu0 0.0
    %588 = vmatpush1.msra.mxu0 %v115
    %589 = vmatprep.subr.mxu0 0.0
    %590 = vmatpush1.msra.mxu0 %v116
    %591 = vmatprep.subr.mxu0 0.0
    %592 = vmatpush1.msra.mxu0 %v117
    %593 = vmatprep.subr.mxu0 0.0
    %594 = vmatpush1.msra.mxu0 %v118
    %595 = vmatprep.subr.mxu0 0.0
    %596 = vmatpush1.msra.mxu0 0.0
    %597 = vmatprep.subr.mxu0 0.0
    %598 = vmatpush1.msra.mxu0 0.0
    %599 = vmatprep.subr.mxu0 0.0
    %600 = vmatpush1.msra.mxu0 0.0
    %601 = vmatprep.subr.mxu0 0.0
    %602 = vmatpush1.msra.mxu0 0.0
    %603 = vmatprep.subr.mxu0 0.0
    %604 = vmatpush1.msra.mxu0 0.0
    %605 = vmatprep.subr.mxu0 0.0
    %606 = vmatpush1.msra.mxu0 0.0
    %607 = vmatprep.subr.mxu0 0.0
    %608 = vmatpush1.msra.mxu0 0.0
    %609 = vmatprep.subr.mxu0 0.0
    %610 = vmatpush1.msra.mxu0 0.0
    %611 = vmatprep.subr.mxu0 0.0
    %612 = vmatpush1.msra.mxu0 0.0
    %613 = vmatprep.subr.mxu0 0.0
    %614 = vmatpush1.msra.mxu0 0.0
    %615 = vmatprep.subr.mxu0 0.0
    %616 = vmatpush1.msra.mxu0 0.0
    %617 = vmatprep.subr.mxu0 0.0
    %618 = vmatpush1.msra.mxu0 0.0
    %619 = vmatprep.subr.mxu0 0.0
    %620 = vmatpush1.msra.mxu0 0.0
    %621 = vmatprep.subr.mxu0 0.0
    %622 = vmatpush1.msra.mxu0 0.0
    %623 = vmatprep.subr.mxu0 0.0
    %624 = vmatpush1.msra.mxu0 0.0
    %625 = vmatprep.subr.mxu0 0.0
    %626 = vmatpush1.msra.mxu0 0.0
    %627 = vmatprep.subr.mxu0 0.0
    %628 = vmatpush1.msra.mxu0 0.0
    %629 = vmatprep.subr.mxu0 0.0
    %630 = vmatpush1.msra.mxu0 0.0
    %631 = vmatprep.subr.mxu0 0.0
    %632 = vmatpush1.msra.mxu0 0.0
    %633 = vmatprep.subr.mxu0 0.0
    %634 = vmatpush1.msra.mxu0 0.0
    %635 = vmatprep.subr.mxu0 0.0
    %636 = vmatpush1.msra.mxu0 0.0
    %637 = vmatprep.subr.mxu0 0.0
    %638 = vmatpush1.msra.mxu0 0.0
    %639 = vmatprep.subr.mxu0 0.0
    %640 = vmatpush1.msra.mxu0 0.0
    %641 = vmatprep.subr.mxu0 0.0
    %642 = vmatpush1.msra.mxu0 0.0
    %643 = vmatprep.subr.mxu0 0.0
    %644 = vmatpush1.msra.mxu0 0.0
    %645 = vmatprep.subr.mxu0 0.0
    %646 = vmatpush1.msra.mxu0 0.0
    %647 = vmatprep.subr.mxu0 0.0
    %648 = vmatpush1.msra.mxu0 0.0
    %649 = vmatprep.subr.mxu0 0.0
    %650 = vmatpush1.msra.mxu0 0.0
    %651 = vmatprep.mubr.f32.mxu0 0.0
    %652 = vmatmul.mubr.f32.gmra.mrb[0].mxu0 %v585
    %v653 = vpop.f32.mrb[0].mxu0
    %v654 = vadd.f32 0.0, %v653
    %v655 = vpop.f32.mrb[0].mxu0
    %656 = vdwg.mxu0
    %v657 = vadd.f32 %v584, %v654
    %v658 = vmul.f32 %v657, 0.5
    %v659 = vtanh.pop %v658
    %v660 = vmul.f32 %v659, 0.5
    %v661 = vadd.f32 %v660, 0.5
    %v662 = vtanh.pop %v657
    %v663 = vmul.f32 %v661, %v570
    %665 = vrot.lane.b32.xlu0 %v662, 64
    %v666 = vpop.permute.xlu0 %665
    %v668 = vmul.f32 %v661, %v666
    %670 = vrot.lane.b32.xlu0 %v668, 32
    %v671 = vpop.permute.xlu0 %670
    %v673 = vadd.f32 %v663, %v671
    %v674 = vtanh.pop %v673
    %676 = vrot.lane.b32.xlu0 %v674, 64
    %v677 = vpop.permute.xlu0 %676
    %v679 = vmul.f32 %v661, %v677
    %681 = vrot.lane.b32.xlu0 %v679, 32
    %v682 = vpop.permute.xlu0 %681
    %s684 = scalar_lea.vmem [#allocation3], 24
    %685 = vst.msk [vmem:[%s684] sm:$0xff] %vm275, %v682
    %s686 = scalar_lea.vmem [#allocation2], 32
    %v687 = vld [vmem:[%s686] sm:$0xff]
    %v688 = vsel %vm275, %v682, 0
    %690 = vmatprep.subr.mxu0 0.0
    %691 = vmatpush1.msra.mxu0 %v115
    %692 = vmatprep.subr.mxu0 0.0
    %693 = vmatpush1.msra.mxu0 %v116
    %694 = vmatprep.subr.mxu0 0.0
    %695 = vmatpush1.msra.mxu0 %v117
    %696 = vmatprep.subr.mxu0 0.0
    %697 = vmatpush1.msra.mxu0 %v118
    %698 = vmatprep.subr.mxu0 0.0
    %699 = vmatpush1.msra.mxu0 0.0
    %700 = vmatprep.subr.mxu0 0.0
    %701 = vmatpush1.msra.mxu0 0.0
    %702 = vmatprep.subr.mxu0 0.0
    %703 = vmatpush1.msra.mxu0 0.0
    %704 = vmatprep.subr.mxu0 0.0
    %705 = vmatpush1.msra.mxu0 0.0
    %706 = vmatprep.subr.mxu0 0.0
    %707 = vmatpush1.msra.mxu0 0.0
    %708 = vmatprep.subr.mxu0 0.0
    %709 = vmatpush1.msra.mxu0 0.0
    %710 = vmatprep.subr.mxu0 0.0
    %711 = vmatpush1.msra.mxu0 0.0
    %712 = vmatprep.subr.mxu0 0.0
    %713 = vmatpush1.msra.mxu0 0.0
    %714 = vmatprep.subr.mxu0 0.0
    %715 = vmatpush1.msra.mxu0 0.0
    %716 = vmatprep.subr.mxu0 0.0
    %717 = vmatpush1.msra.mxu0 0.0
    %718 = vmatprep.subr.mxu0 0.0
    %719 = vmatpush1.msra.mxu0 0.0
    %720 = vmatprep.subr.mxu0 0.0
    %721 = vmatpush1.msra.mxu0 0.0
    %722 = vmatprep.subr.mxu0 0.0
    %723 = vmatpush1.msra.mxu0 0.0
    %724 = vmatprep.subr.mxu0 0.0
    %725 = vmatpush1.msra.mxu0 0.0
    %726 = vmatprep.subr.mxu0 0.0
    %727 = vmatpush1.msra.mxu0 0.0
    %728 = vmatprep.subr.mxu0 0.0
    %729 = vmatpush1.msra.mxu0 0.0
    %730 = vmatprep.subr.mxu0 0.0
    %731 = vmatpush1.msra.mxu0 0.0
    %732 = vmatprep.subr.mxu0 0.0
    %733 = vmatpush1.msra.mxu0 0.0
    %734 = vmatprep.subr.mxu0 0.0
    %735 = vmatpush1.msra.mxu0 0.0
    %736 = vmatprep.subr.mxu0 0.0
    %737 = vmatpush1.msra.mxu0 0.0
    %738 = vmatprep.subr.mxu0 0.0
    %739 = vmatpush1.msra.mxu0 0.0
    %740 = vmatprep.subr.mxu0 0.0
    %741 = vmatpush1.msra.mxu0 0.0
    %742 = vmatprep.subr.mxu0 0.0
    %743 = vmatpush1.msra.mxu0 0.0
    %744 = vmatprep.subr.mxu0 0.0
    %745 = vmatpush1.msra.mxu0 0.0
    %746 = vmatprep.subr.mxu0 0.0
    %747 = vmatpush1.msra.mxu0 0.0
    %748 = vmatprep.subr.mxu0 0.0
    %749 = vmatpush1.msra.mxu0 0.0
    %750 = vmatprep.subr.mxu0 0.0
    %751 = vmatpush1.msra.mxu0 0.0
    %752 = vmatprep.subr.mxu0 0.0
    %753 = vmatpush1.msra.mxu0 0.0
    %754 = vmatprep.mubr.f32.mxu0 0.0
    %755 = vmatmul.mubr.f32.gmra.mrb[0].mxu0 %v688
    %v756 = vpop.f32.mrb[0].mxu0
    %v757 = vadd.f32 0.0, %v756
    %v758 = vpop.f32.mrb[0].mxu0
    %759 = vdwg.mxu0
    %v760 = vadd.f32 %v687, %v757
    %v761 = vmul.f32 %v760, 0.5
    %v762 = vtanh.pop %v761
    %v763 = vmul.f32 %v762, 0.5
    %v764 = vadd.f32 %v763, 0.5
    %v765 = vtanh.pop %v760
    %v766 = vmul.f32 %v764, %v673
    %768 = vrot.lane.b32.xlu0 %v765, 64
    %v769 = vpop.permute.xlu0 %768
    %v771 = vmul.f32 %v764, %v769
    %773 = vrot.lane.b32.xlu0 %v771, 32
    %v774 = vpop.permute.xlu0 %773
    %v776 = vadd.f32 %v766, %v774
    %v777 = vtanh.pop %v776
    %779 = vrot.lane.b32.xlu0 %v777, 64
    %v780 = vpop.permute.xlu0 %779
    %v782 = vmul.f32 %v764, %v780
    %784 = vrot.lane.b32.xlu0 %v782, 32
    %v785 = vpop.permute.xlu0 %784
    %s787 = scalar_lea.vmem [#allocation3], 32
    %788 = vst.msk [vmem:[%s787] sm:$0xff] %vm275, %v785
    %s789 = scalar_lea.vmem [#allocation2], 40
    %v790 = vld [vmem:[%s789] sm:$0xff]
    %v791 = vsel %vm275, %v785, 0
    %793 = vmatprep.subr.mxu0 0.0
    %794 = vmatpush1.msra.mxu0 %v115
    %795 = vmatprep.subr.mxu0 0.0
    %796 = vmatpush1.msra.mxu0 %v116
    %797 = vmatprep.subr.mxu0 0.0
    %798 = vmatpush1.msra.mxu0 %v117
    %799 = vmatprep.subr.mxu0 0.0
    %800 = vmatpush1.msra.mxu0 %v118
    %801 = vmatprep.subr.mxu0 0.0
    %802 = vmatpush1.msra.mxu0 0.0
    %803 = vmatprep.subr.mxu0 0.0
    %804 = vmatpush1.msra.mxu0 0.0
    %805 = vmatprep.subr.mxu0 0.0
    %806 = vmatpush1.msra.mxu0 0.0
    %807 = vmatprep.subr.mxu0 0.0
    %808 = vmatpush1.msra.mxu0 0.0
    %809 = vmatprep.subr.mxu0 0.0
    %810 = vmatpush1.msra.mxu0 0.0
    %811 = vmatprep.subr.mxu0 0.0
    %812 = vmatpush1.msra.mxu0 0.0
    %813 = vmatprep.subr.mxu0 0.0
    %814 = vmatpush1.msra.mxu0 0.0
    %815 = vmatprep.subr.mxu0 0.0
    %816 = vmatpush1.msra.mxu0 0.0
    %817 = vmatprep.subr.mxu0 0.0
    %818 = vmatpush1.msra.mxu0 0.0
    %819 = vmatprep.subr.mxu0 0.0
    %820 = vmatpush1.msra.mxu0 0.0
    %821 = vmatprep.subr.mxu0 0.0
    %822 = vmatpush1.msra.mxu0 0.0
    %823 = vmatprep.subr.mxu0 0.0
    %824 = vmatpush1.msra.mxu0 0.0
    %825 = vmatprep.subr.mxu0 0.0
    %826 = vmatpush1.msra.mxu0 0.0
    %827 = vmatprep.subr.mxu0 0.0
    %828 = vmatpush1.msra.mxu0 0.0
    %829 = vmatprep.subr.mxu0 0.0
    %830 = vmatpush1.msra.mxu0 0.0
    %831 = vmatprep.subr.mxu0 0.0
    %832 = vmatpush1.msra.mxu0 0.0
    %833 = vmatprep.subr.mxu0 0.0
    %834 = vmatpush1.msra.mxu0 0.0
    %835 = vmatprep.subr.mxu0 0.0
    %836 = vmatpush1.msra.mxu0 0.0
    %837 = vmatprep.subr.mxu0 0.0
    %838 = vmatpush1.msra.mxu0 0.0
    %839 = vmatprep.subr.mxu0 0.0
    %840 = vmatpush1.msra.mxu0 0.0
    %841 = vmatprep.subr.mxu0 0.0
    %842 = vmatpush1.msra.mxu0 0.0
    %843 = vmatprep.subr.mxu0 0.0
    %844 = vmatpush1.msra.mxu0 0.0
    %845 = vmatprep.subr.mxu0 0.0
    %846 = vmatpush1.msra.mxu0 0.0
    %847 = vmatprep.subr.mxu0 0.0
    %848 = vmatpush1.msra.mxu0 0.0
    %849 = vmatprep.subr.mxu0 0.0
    %850 = vmatpush1.msra.mxu0 0.0
    %851 = vmatprep.subr.mxu0 0.0
    %852 = vmatpush1.msra.mxu0 0.0
    %853 = vmatprep.subr.mxu0 0.0
    %854 = vmatpush1.msra.mxu0 0.0
    %855 = vmatprep.subr.mxu0 0.0
    %856 = vmatpush1.msra.mxu0 0.0
    %857 = vmatprep.mubr.f32.mxu0 0.0
    %858 = vmatmul.mubr.f32.gmra.mrb[0].mxu0 %v791
    %v859 = vpop.f32.mrb[0].mxu0
    %v860 = vadd.f32 0.0, %v859
    %v861 = vpop.f32.mrb[0].mxu0
    %862 = vdwg.mxu0
    %v863 = vadd.f32 %v790, %v860
    %v864 = vmul.f32 %v863, 0.5
    %v865 = vtanh.pop %v864
    %v866 = vmul.f32 %v865, 0.5
    %v867 = vadd.f32 %v866, 0.5
    %v868 = vtanh.pop %v863
    %v869 = vmul.f32 %v867, %v776
    %871 = vrot.lane.b32.xlu0 %v868, 64
    %v872 = vpop.permute.xlu0 %871
    %v874 = vmul.f32 %v867, %v872
    %876 = vrot.lane.b32.xlu0 %v874, 32
    %v877 = vpop.permute.xlu0 %876
    %v879 = vadd.f32 %v869, %v877
    %v880 = vtanh.pop %v879
    %882 = vrot.lane.b32.xlu0 %v880, 64
    %v883 = vpop.permute.xlu0 %882
    %v885 = vmul.f32 %v867, %v883
    %887 = vrot.lane.b32.xlu0 %v885, 32
    %v888 = vpop.permute.xlu0 %887
    %s890 = scalar_lea.vmem [#allocation3], 40
    %891 = vst.msk [vmem:[%s890] sm:$0xff] %vm275, %v888
    %s892 = scalar_lea.vmem [#allocation2], 48
    %v893 = vld [vmem:[%s892] sm:$0xff]
    %v894 = vsel %vm275, %v888, 0
    %896 = vmatprep.subr.mxu0 0.0
    %897 = vmatpush1.msra.mxu0 %v115
    %898 = vmatprep.subr.mxu0 0.0
    %899 = vmatpush1.msra.mxu0 %v116
    %900 = vmatprep.subr.mxu0 0.0
    %901 = vmatpush1.msra.mxu0 %v117
    %902 = vmatprep.subr.mxu0 0.0
    %903 = vmatpush1.msra.mxu0 %v118
    %904 = vmatprep.subr.mxu0 0.0
    %905 = vmatpush1.msra.mxu0 0.0
    %906 = vmatprep.subr.mxu0 0.0
    %907 = vmatpush1.msra.mxu0 0.0
    %908 = vmatprep.subr.mxu0 0.0
    %909 = vmatpush1.msra.mxu0 0.0
    %910 = vmatprep.subr.mxu0 0.0
    %911 = vmatpush1.msra.mxu0 0.0
    %912 = vmatprep.subr.mxu0 0.0
    %913 = vmatpush1.msra.mxu0 0.0
    %914 = vmatprep.subr.mxu0 0.0
    %915 = vmatpush1.msra.mxu0 0.0
    %916 = vmatprep.subr.mxu0 0.0
    %917 = vmatpush1.msra.mxu0 0.0
    %918 = vmatprep.subr.mxu0 0.0
    %919 = vmatpush1.msra.mxu0 0.0
    %920 = vmatprep.subr.mxu0 0.0
    %921 = vmatpush1.msra.mxu0 0.0
    %922 = vmatprep.subr.mxu0 0.0
    %923 = vmatpush1.msra.mxu0 0.0
    %924 = vmatprep.subr.mxu0 0.0
    %925 = vmatpush1.msra.mxu0 0.0
    %926 = vmatprep.subr.mxu0 0.0
    %927 = vmatpush1.msra.mxu0 0.0
    %928 = vmatprep.subr.mxu0 0.0
    %929 = vmatpush1.msra.mxu0 0.0
    %930 = vmatprep.subr.mxu0 0.0
    %931 = vmatpush1.msra.mxu0 0.0
    %932 = vmatprep.subr.mxu0 0.0
    %933 = vmatpush1.msra.mxu0 0.0
    %934 = vmatprep.subr.mxu0 0.0
    %935 = vmatpush1.msra.mxu0 0.0
    %936 = vmatprep.subr.mxu0 0.0
    %937 = vmatpush1.msra.mxu0 0.0
    %938 = vmatprep.subr.mxu0 0.0
    %939 = vmatpush1.msra.mxu0 0.0
    %940 = vmatprep.subr.mxu0 0.0
    %941 = vmatpush1.msra.mxu0 0.0
    %942 = vmatprep.subr.mxu0 0.0
    %943 = vmatpush1.msra.mxu0 0.0
    %944 = vmatprep.subr.mxu0 0.0
    %945 = vmatpush1.msra.mxu0 0.0
    %946 = vmatprep.subr.mxu0 0.0
    %947 = vmatpush1.msra.mxu0 0.0
    %948 = vmatprep.subr.mxu0 0.0
    %949 = vmatpush1.msra.mxu0 0.0
    %950 = vmatprep.subr.mxu0 0.0
    %951 = vmatpush1.msra.mxu0 0.0
    %952 = vmatprep.subr.mxu0 0.0
    %953 = vmatpush1.msra.mxu0 0.0
    %954 = vmatprep.subr.mxu0 0.0
    %955 = vmatpush1.msra.mxu0 0.0
    %956 = vmatprep.subr.mxu0 0.0
    %957 = vmatpush1.msra.mxu0 0.0
    %958 = vmatprep.subr.mxu0 0.0
    %959 = vmatpush1.msra.mxu0 0.0
    %960 = vmatprep.mubr.f32.mxu0 0.0
    %961 = vmatmul.mubr.f32.gmra.mrb[0].mxu0 %v894
    %v962 = vpop.f32.mrb[0].mxu0
    %v963 = vadd.f32 0.0, %v962
    %v964 = vpop.f32.mrb[0].mxu0
    %965 = vdwg.mxu0
    %v966 = vadd.f32 %v893, %v963
    %v967 = vmul.f32 %v966, 0.5
    %v968 = vtanh.pop %v967
    %v969 = vmul.f32 %v968, 0.5
    %v970 = vadd.f32 %v969, 0.5
    %v971 = vtanh.pop %v966
    %v972 = vmul.f32 %v970, %v879
    %974 = vrot.lane.b32.xlu0 %v971, 64
    %v975 = vpop.permute.xlu0 %974
    %v977 = vmul.f32 %v970, %v975
    %979 = vrot.lane.b32.xlu0 %v977, 32
    %v980 = vpop.permute.xlu0 %979
    %v982 = vadd.f32 %v972, %v980
    %v983 = vtanh.pop %v982
    %985 = vrot.lane.b32.xlu0 %v983, 64
    %v986 = vpop.permute.xlu0 %985
    %v988 = vmul.f32 %v970, %v986
    %990 = vrot.lane.b32.xlu0 %v988, 32
    %v991 = vpop.permute.xlu0 %990
    %s993 = scalar_lea.vmem [#allocation3], 48
    %994 = vst.msk [vmem:[%s993] sm:$0xff] %vm275, %v991
    %s995 = scalar_lea.vmem [#allocation2], 56
    %v996 = vld [vmem:[%s995] sm:$0xff]
    %v997 = vsel %vm275, %v991, 0
    %999 = vmatprep.subr.mxu0 0.0
    %1000 = vmatpush1.msra.mxu0 %v115
    %1001 = vmatprep.subr.mxu0 0.0
    %1002 = vmatpush1.msra.mxu0 %v116
    %1003 = vmatprep.subr.mxu0 0.0
    %1004 = vmatpush1.msra.mxu0 %v117
    %1005 = vmatprep.subr.mxu0 0.0
    %1006 = vmatpush1.msra.mxu0 %v118
    %1007 = vmatprep.subr.mxu0 0.0
    %1008 = vmatpush1.msra.mxu0 0.0
    %1009 = vmatprep.subr.mxu0 0.0
    %1010 = vmatpush1.msra.mxu0 0.0
    %1011 = vmatprep.subr.mxu0 0.0
    %1012 = vmatpush1.msra.mxu0 0.0
    %1013 = vmatprep.subr.mxu0 0.0
    %1014 = vmatpush1.msra.mxu0 0.0
    %1015 = vmatprep.subr.mxu0 0.0
    %1016 = vmatpush1.msra.mxu0 0.0
    %1017 = vmatprep.subr.mxu0 0.0
    %1018 = vmatpush1.msra.mxu0 0.0
    %1019 = vmatprep.subr.mxu0 0.0
    %1020 = vmatpush1.msra.mxu0 0.0
    %1021 = vmatprep.subr.mxu0 0.0
    %1022 = vmatpush1.msra.mxu0 0.0
    %1023 = vmatprep.subr.mxu0 0.0
    %1024 = vmatpush1.msra.mxu0 0.0
    %1025 = vmatprep.subr.mxu0 0.0
    %1026 = vmatpush1.msra.mxu0 0.0
    %1027 = vmatprep.subr.mxu0 0.0
    %1028 = vmatpush1.msra.mxu0 0.0
    %1029 = vmatprep.subr.mxu0 0.0
    %1030 = vmatpush1.msra.mxu0 0.0
    %1031 = vmatprep.subr.mxu0 0.0
    %1032 = vmatpush1.msra.mxu0 0.0
    %1033 = vmatprep.subr.mxu0 0.0
    %1034 = vmatpush1.msra.mxu0 0.0
    %1035 = vmatprep.subr.mxu0 0.0
    %1036 = vmatpush1.msra.mxu0 0.0
    %1037 = vmatprep.subr.mxu0 0.0
    %1038 = vmatpush1.msra.mxu0 0.0
    %1039 = vmatprep.subr.mxu0 0.0
    %1040 = vmatpush1.msra.mxu0 0.0
    %1041 = vmatprep.subr.mxu0 0.0
    %1042 = vmatpush1.msra.mxu0 0.0
    %1043 = vmatprep.subr.mxu0 0.0
    %1044 = vmatpush1.msra.mxu0 0.0
    %1045 = vmatprep.subr.mxu0 0.0
    %1046 = vmatpush1.msra.mxu0 0.0
    %1047 = vmatprep.subr.mxu0 0.0
    %1048 = vmatpush1.msra.mxu0 0.0
    %1049 = vmatprep.subr.mxu0 0.0
    %1050 = vmatpush1.msra.mxu0 0.0
    %1051 = vmatprep.subr.mxu0 0.0
    %1052 = vmatpush1.msra.mxu0 0.0
    %1053 = vmatprep.subr.mxu0 0.0
    %1054 = vmatpush1.msra.mxu0 0.0
    %1055 = vmatprep.subr.mxu0 0.0
    %1056 = vmatpush1.msra.mxu0 0.0
    %1057 = vmatprep.subr.mxu0 0.0
    %1058 = vmatpush1.msra.mxu0 0.0
    %1059 = vmatprep.subr.mxu0 0.0
    %1060 = vmatpush1.msra.mxu0 0.0
    %1061 = vmatprep.subr.mxu0 0.0
    %1062 = vmatpush1.msra.mxu0 0.0
    %1063 = vmatprep.mubr.f32.mxu0 0.0
    %1064 = vmatmul.mubr.f32.gmra.mrb[0].mxu0 %v997
    %v1065 = vpop.f32.mrb[0].mxu0
    %v1066 = vadd.f32 0.0, %v1065
    %v1067 = vpop.f32.mrb[0].mxu0
    %1068 = vdwg.mxu0
    %v1069 = vadd.f32 %v996, %v1066
    %v1070 = vmul.f32 %v1069, 0.5
    %v1071 = vtanh.pop %v1070
    %v1072 = vmul.f32 %v1071, 0.5
    %v1073 = vadd.f32 %v1072, 0.5
    %v1074 = vtanh.pop %v1069
    %v1075 = vmul.f32 %v1073, %v982
    %1077 = vrot.lane.b32.xlu0 %v1074, 64
    %v1078 = vpop.permute.xlu0 %1077
    %v1080 = vmul.f32 %v1073, %v1078
    %1082 = vrot.lane.b32.xlu0 %v1080, 32
    %v1083 = vpop.permute.xlu0 %1082
    %v1085 = vadd.f32 %v1075, %v1083
    %v1086 = vtanh.pop %v1085
    %1088 = vrot.lane.b32.xlu0 %v1086, 64
    %v1089 = vpop.permute.xlu0 %1088
    %v1091 = vmul.f32 %v1073, %v1089
    %1093 = vrot.lane.b32.xlu0 %v1091, 32
    %v1094 = vpop.permute.xlu0 %1093
    %s1096 = scalar_lea.vmem [#allocation3], 56
    %1097 = vst.msk [vmem:[%s1096] sm:$0xff] %vm275, %v1094
    %v1098 = vld [vmem:[#allocation12] sm:$0xff]
    %v1099 = vld [vmem:[#allocation12 + $0x8] sm:$0xff]
    %v1100 = vld [vmem:[#allocation12 + $0x10] sm:$0xff]
    %v1101 = vld [vmem:[#allocation12 + $0x18] sm:$0xff]
    %v1102 = vld [vmem:[%s6] sm:$0x1]
    %v1103 = vld [vmem:[#allocation3] sm:$0xff]
    %v1104 = vld [vmem:[#allocation3 + $0x8] sm:$0xff]
    %v1105 = vld [vmem:[#allocation3 + $0x10] sm:$0xff]
    %v1106 = vld [vmem:[#allocation3 + $0x18] sm:$0xff]
    %v1107 = vld [vmem:[#allocation3 + $0x20] sm:$0xff]
    %v1108 = vld [vmem:[#allocation3 + $0x28] sm:$0xff]
    %v1109 = vld [vmem:[#allocation3 + $0x30] sm:$0xff]
    %v1110 = vld [vmem:[#allocation3 + $0x38] sm:$0xff]
    %v1111 = vld [vmem:[#allocation10] sm:$0xff]
    %v1112 = vld [vmem:[#allocation10 + $0x8] sm:$0xff]
    %v1113 = vld [vmem:[#allocation10 + $0x10] sm:$0xff]
    %v1114 = vld [vmem:[#allocation10 + $0x18] sm:$0xff]
    %v1116 = vlaneseq
    %v1117 = vshrl.u32 %v1116, 7
    %v1118 = vsub.s32 0, %v1117
    %v1119 = vrot.slane %v1102, %v1118
    %v1122 = vsel %vm275, %v1103, 0
    %v1125 = vsel %vm275, %v1104, 0
    %v1128 = vsel %vm275, %v1105, 0
    %v1131 = vsel %vm275, %v1106, 0
    %v1134 = vsel %vm275, %v1107, 0
    %v1137 = vsel %vm275, %v1108, 0
    %v1140 = vsel %vm275, %v1109, 0
    %v1143 = vsel %vm275, %v1110, 0
    %1145 = vmatprep.subr.mxu0 0.0
    %1146 = vmatpush1.msra.mxu0 %v1111
    %1147 = vmatprep.subr.mxu0 0.0
    %1148 = vmatpush1.msra.mxu0 %v1112
    %1149 = vmatprep.subr.mxu0 0.0
    %1150 = vmatpush1.msra.mxu0 %v1113
    %1151 = vmatprep.subr.mxu0 0.0
    %1152 = vmatpush1.msra.mxu0 %v1114
    %1153 = vmatprep.subr.mxu0 0.0
    %1154 = vmatpush1.msra.mxu0 0.0
    %1155 = vmatprep.subr.mxu0 0.0
    %1156 = vmatpush1.msra.mxu0 0.0
    %1157 = vmatprep.subr.mxu0 0.0
    %1158 = vmatpush1.msra.mxu0 0.0
    %1159 = vmatprep.subr.mxu0 0.0
    %1160 = vmatpush1.msra.mxu0 0.0
    %1161 = vmatprep.subr.mxu0 0.0
    %1162 = vmatpush1.msra.mxu0 0.0
    %1163 = vmatprep.subr.mxu0 0.0
    %1164 = vmatpush1.msra.mxu0 0.0
    %1165 = vmatprep.subr.mxu0 0.0
    %1166 = vmatpush1.msra.mxu0 0.0
    %1167 = vmatprep.subr.mxu0 0.0
    %1168 = vmatpush1.msra.mxu0 0.0
    %1169 = vmatprep.subr.mxu0 0.0
    %1170 = vmatpush1.msra.mxu0 0.0
    %1171 = vmatprep.subr.mxu0 0.0
    %1172 = vmatpush1.msra.mxu0 0.0
    %1173 = vmatprep.subr.mxu0 0.0
    %1174 = vmatpush1.msra.mxu0 0.0
    %1175 = vmatprep.subr.mxu0 0.0
    %1176 = vmatpush1.msra.mxu0 0.0
    %1177 = vmatprep.subr.mxu0 0.0
    %1178 = vmatpush1.msra.mxu0 0.0
    %1179 = vmatprep.subr.mxu0 0.0
    %1180 = vmatpush1.msra.mxu0 0.0
    %1181 = vmatprep.subr.mxu0 0.0
    %1182 = vmatpush1.msra.mxu0 0.0
    %1183 = vmatprep.subr.mxu0 0.0
    %1184 = vmatpush1.msra.mxu0 0.0
    %1185 = vmatprep.subr.mxu0 0.0
    %1186 = vmatpush1.msra.mxu0 0.0
    %1187 = vmatprep.subr.mxu0 0.0
    %1188 = vmatpush1.msra.mxu0 0.0
    %1189 = vmatprep.subr.mxu0 0.0
    %1190 = vmatpush1.msra.mxu0 0.0
    %1191 = vmatprep.subr.mxu0 0.0
    %1192 = vmatpush1.msra.mxu0 0.0
    %1193 = vmatprep.subr.mxu0 0.0
    %1194 = vmatpush1.msra.mxu0 0.0
    %1195 = vmatprep.subr.mxu0 0.0
    %1196 = vmatpush1.msra.mxu0 0.0
    %1197 = vmatprep.subr.mxu0 0.0
    %1198 = vmatpush1.msra.mxu0 0.0
    %1199 = vmatprep.subr.mxu0 0.0
    %1200 = vmatpush1.msra.mxu0 0.0
    %1201 = vmatprep.subr.mxu0 0.0
    %1202 = vmatpush1.msra.mxu0 0.0
    %1203 = vmatprep.subr.mxu0 0.0
    %1204 = vmatpush1.msra.mxu0 0.0
    %1205 = vmatprep.subr.mxu0 0.0
    %1206 = vmatpush1.msra.mxu0 0.0
    %1207 = vmatprep.subr.mxu0 0.0
    %1208 = vmatpush1.msra.mxu0 0.0
    %1209 = vmatprep.mubr.f32.mxu0 0.0
    %1210 = vmatmul.mubr.f32.gmra.mrb[0].mxu0 %v1122
    %v1211 = vpop.f32.mrb[0].mxu0
    %v1212 = vadd.f32 %v1119, %v1211
    %v1213 = vpop.f32.mrb[0].mxu0
    %1214 = vmatprep.mubr.f32.mxu0 0.0
    %1215 = vmatmul.mubr.f32.gmra.mrb[0].mxu0 %v1125
    %v1216 = vpop.f32.mrb[0].mxu0
    %v1217 = vadd.f32 %v1119, %v1216
    %v1218 = vpop.f32.mrb[0].mxu0
    %1219 = vmatprep.mubr.f32.mxu0 0.0
    %1220 = vmatmul.mubr.f32.gmra.mrb[0].mxu0 %v1128
    %v1221 = vpop.f32.mrb[0].mxu0
    %v1222 = vadd.f32 %v1119, %v1221
    %v1223 = vpop.f32.mrb[0].mxu0
    %1224 = vmatprep.mubr.f32.mxu0 0.0
    %1225 = vmatmul.mubr.f32.gmra.mrb[0].mxu0 %v1131
    %v1226 = vpop.f32.mrb[0].mxu0
    %v1227 = vadd.f32 %v1119, %v1226
    %v1228 = vpop.f32.mrb[0].mxu0
    %1229 = vmatprep.mubr.f32.mxu0 0.0
    %1230 = vmatmul.mubr.f32.gmra.mrb[0].mxu0 %v1134
    %v1231 = vpop.f32.mrb[0].mxu0
    %v1232 = vadd.f32 %v1119, %v1231
    %v1233 = vpop.f32.mrb[0].mxu0
    %1234 = vmatprep.mubr.f32.mxu0 0.0
    %1235 = vmatmul.mubr.f32.gmra.mrb[0].mxu0 %v1137
    %v1236 = vpop.f32.mrb[0].mxu0
    %v1237 = vadd.f32 %v1119, %v1236
    %v1238 = vpop.f32.mrb[0].mxu0
    %1239 = vmatprep.mubr.f32.mxu0 0.0
    %1240 = vmatmul.mubr.f32.gmra.mrb[0].mxu0 %v1140
    %v1241 = vpop.f32.mrb[0].mxu0
    %v1242 = vadd.f32 %v1119, %v1241
    %v1243 = vpop.f32.mrb[0].mxu0
    %1244 = vmatprep.mubr.f32.mxu0 0.0
    %1245 = vmatmul.mubr.f32.gmra.mrb[0].mxu0 %v1143
    %v1246 = vpop.f32.mrb[0].mxu0
    %v1247 = vadd.f32 %v1119, %v1246
    %v1248 = vpop.f32.mrb[0].mxu0
    %1249 = vdwg.mxu0
    %1250 = vst [vmem:[#allocation2] sm:$0xff] %v1212
    %1251 = vst [vmem:[#allocation2 + $0x8] sm:$0xff] %v1217
    %1252 = vst [vmem:[#allocation2 + $0x10] sm:$0xff] %v1222
    %1253 = vst [vmem:[#allocation2 + $0x18] sm:$0xff] %v1227
    %1254 = vst [vmem:[#allocation2 + $0x20] sm:$0xff] %v1232
    %1255 = vst [vmem:[#allocation2 + $0x28] sm:$0xff] %v1237
    %1256 = vst [vmem:[#allocation2 + $0x30] sm:$0xff] %v1242
    %1257 = vst [vmem:[#allocation2 + $0x38] sm:$0xff] %v1247
    %v1258 = vld [vmem:[#allocation2] sm:$0xff]
    %1259 = vmatprep.subr.mxu0 0.0
    %1260 = vmatpush1.msra.mxu0 %v1098
    %1261 = vmatprep.subr.mxu0 0.0
    %1262 = vmatpush1.msra.mxu0 %v1099
    %1263 = vmatprep.subr.mxu0 0.0
    %1264 = vmatpush1.msra.mxu0 %v1100
    %1265 = vmatprep.subr.mxu0 0.0
    %1266 = vmatpush1.msra.mxu0 %v1101
    %1267 = vmatprep.subr.mxu0 0.0
    %1268 = vmatpush1.msra.mxu0 0.0
    %1269 = vmatprep.subr.mxu0 0.0
    %1270 = vmatpush1.msra.mxu0 0.0
    %1271 = vmatprep.subr.mxu0 0.0
    %1272 = vmatpush1.msra.mxu0 0.0
    %1273 = vmatprep.subr.mxu0 0.0
    %1274 = vmatpush1.msra.mxu0 0.0
    %1275 = vmatprep.subr.mxu0 0.0
    %1276 = vmatpush1.msra.mxu0 0.0
    %1277 = vmatprep.subr.mxu0 0.0
    %1278 = vmatpush1.msra.mxu0 0.0
    %1279 = vmatprep.subr.mxu0 0.0
    %1280 = vmatpush1.msra.mxu0 0.0
    %1281 = vmatprep.subr.mxu0 0.0
    %1282 = vmatpush1.msra.mxu0 0.0
    %1283 = vmatprep.subr.mxu0 0.0
    %1284 = vmatpush1.msra.mxu0 0.0
    %1285 = vmatprep.subr.mxu0 0.0
    %1286 = vmatpush1.msra.mxu0 0.0
    %1287 = vmatprep.subr.mxu0 0.0
    %1288 = vmatpush1.msra.mxu0 0.0
    %1289 = vmatprep.subr.mxu0 0.0
    %1290 = vmatpush1.msra.mxu0 0.0
    %1291 = vmatprep.subr.mxu0 0.0
    %1292 = vmatpush1.msra.mxu0 0.0
    %1293 = vmatprep.subr.mxu0 0.0
    %1294 = vmatpush1.msra.mxu0 0.0
    %1295 = vmatprep.subr.mxu0 0.0
    %1296 = vmatpush1.msra.mxu0 0.0
    %1297 = vmatprep.subr.mxu0 0.0
    %1298 = vmatpush1.msra.mxu0 0.0
    %1299 = vmatprep.subr.mxu0 0.0
    %1300 = vmatpush1.msra.mxu0 0.0
    %1301 = vmatprep.subr.mxu0 0.0
    %1302 = vmatpush1.msra.mxu0 0.0
    %1303 = vmatprep.subr.mxu0 0.0
    %1304 = vmatpush1.msra.mxu0 0.0
    %1305 = vmatprep.subr.mxu0 0.0
    %1306 = vmatpush1.msra.mxu0 0.0
    %1307 = vmatprep.subr.mxu0 0.0
    %1308 = vmatpush1.msra.mxu0 0.0
    %1309 = vmatprep.subr.mxu0 0.0
    %1310 = vmatpush1.msra.mxu0 0.0
    %1311 = vmatprep.subr.mxu0 0.0
    %1312 = vmatpush1.msra.mxu0 0.0
    %1313 = vmatprep.subr.mxu0 0.0
    %1314 = vmatpush1.msra.mxu0 0.0
    %1315 = vmatprep.subr.mxu0 0.0
    %1316 = vmatpush1.msra.mxu0 0.0
    %1317 = vmatprep.subr.mxu0 0.0
    %1318 = vmatpush1.msra.mxu0 0.0
    %1319 = vmatprep.subr.mxu0 0.0
    %1320 = vmatpush1.msra.mxu0 0.0
    %1321 = vmatprep.subr.mxu0 0.0
    %1322 = vmatpush1.msra.mxu0 0.0
    %1323 = vmatprep.mubr.f32.mxu0 0.0
    %1324 = vmatmul.mubr.f32.gmra.mrb[0].mxu0 %v277
    %v1325 = vpop.f32.mrb[0].mxu0
    %v1326 = vadd.f32 0.0, %v1325
    %v1327 = vpop.f32.mrb[0].mxu0
    %1328 = vdwg.mxu0
    %v1329 = vadd.f32 %v1258, %v1326
    %v1330 = vmul.f32 %v1329, 0.5
    %v1331 = vtanh.pop %v1330
    %v1332 = vmul.f32 %v1331, 0.5
    %v1333 = vadd.f32 %v1332, 0.5
    %v1334 = vtanh.pop %v1329
    %v1335 = vmul.f32 %v1333, 0.0
    %1337 = vrot.lane.b32.xlu0 %v1334, 64
    %v1338 = vpop.permute.xlu0 %1337
    %v1340 = vmul.f32 %v1333, %v1338
    %1342 = vrot.lane.b32.xlu0 %v1340, 32
    %v1343 = vpop.permute.xlu0 %1342
    %v1345 = vadd.f32 %v1335, %v1343
    %v1346 = vtanh.pop %v1345
    %1348 = vrot.lane.b32.xlu0 %v1346, 64
    %v1349 = vpop.permute.xlu0 %1348
    %v1351 = vmul.f32 %v1333, %v1349
    %v1352 = vld [vmem:[%s377] sm:$0xff]
    %1354 = vrot.lane.b32.xlu0 %v1351, 32
    %v1355 = vpop.permute.xlu0 %1354
    %v1356 = vsel %vm275, %v1355, 0
    %1358 = vmatprep.subr.mxu0 0.0
    %1359 = vmatpush1.msra.mxu0 %v1098
    %1360 = vmatprep.subr.mxu0 0.0
    %1361 = vmatpush1.msra.mxu0 %v1099
    %1362 = vmatprep.subr.mxu0 0.0
    %1363 = vmatpush1.msra.mxu0 %v1100
    %1364 = vmatprep.subr.mxu0 0.0
    %1365 = vmatpush1.msra.mxu0 %v1101
    %1366 = vmatprep.subr.mxu0 0.0
    %1367 = vmatpush1.msra.mxu0 0.0
    %1368 = vmatprep.subr.mxu0 0.0
    %1369 = vmatpush1.msra.mxu0 0.0
    %1370 = vmatprep.subr.mxu0 0.0
    %1371 = vmatpush1.msra.mxu0 0.0
    %1372 = vmatprep.subr.mxu0 0.0
    %1373 = vmatpush1.msra.mxu0 0.0
    %1374 = vmatprep.subr.mxu0 0.0
    %1375 = vmatpush1.msra.mxu0 0.0
    %1376 = vmatprep.subr.mxu0 0.0
    %1377 = vmatpush1.msra.mxu0 0.0
    %1378 = vmatprep.subr.mxu0 0.0
    %1379 = vmatpush1.msra.mxu0 0.0
    %1380 = vmatprep.subr.mxu0 0.0
    %1381 = vmatpush1.msra.mxu0 0.0
    %1382 = vmatprep.subr.mxu0 0.0
    %1383 = vmatpush1.msra.mxu0 0.0
    %1384 = vmatprep.subr.mxu0 0.0
    %1385 = vmatpush1.msra.mxu0 0.0
    %1386 = vmatprep.subr.mxu0 0.0
    %1387 = vmatpush1.msra.mxu0 0.0
    %1388 = vmatprep.subr.mxu0 0.0
    %1389 = vmatpush1.msra.mxu0 0.0
    %1390 = vmatprep.subr.mxu0 0.0
    %1391 = vmatpush1.msra.mxu0 0.0
    %1392 = vmatprep.subr.mxu0 0.0
    %1393 = vmatpush1.msra.mxu0 0.0
    %1394 = vmatprep.subr.mxu0 0.0
    %1395 = vmatpush1.msra.mxu0 0.0
    %1396 = vmatprep.subr.mxu0 0.0
    %1397 = vmatpush1.msra.mxu0 0.0
    %1398 = vmatprep.subr.mxu0 0.0
    %1399 = vmatpush1.msra.mxu0 0.0
    %1400 = vmatprep.subr.mxu0 0.0
    %1401 = vmatpush1.msra.mxu0 0.0
    %1402 = vmatprep.subr.mxu0 0.0
    %1403 = vmatpush1.msra.mxu0 0.0
    %1404 = vmatprep.subr.mxu0 0.0
    %1405 = vmatpush1.msra.mxu0 0.0
    %1406 = vmatprep.subr.mxu0 0.0
    %1407 = vmatpush1.msra.mxu0 0.0
    %1408 = vmatprep.subr.mxu0 0.0
    %1409 = vmatpush1.msra.mxu0 0.0
    %1410 = vmatprep.subr.mxu0 0.0
    %1411 = vmatpush1.msra.mxu0 0.0
    %1412 = vmatprep.subr.mxu0 0.0
    %1413 = vmatpush1.msra.mxu0 0.0
    %1414 = vmatprep.subr.mxu0 0.0
    %1415 = vmatpush1.msra.mxu0 0.0
    %1416 = vmatprep.subr.mxu0 0.0
    %1417 = vmatpush1.msra.mxu0 0.0
    %1418 = vmatprep.subr.mxu0 0.0
    %1419 = vmatpush1.msra.mxu0 0.0
    %1420 = vmatprep.subr.mxu0 0.0
    %1421 = vmatpush1.msra.mxu0 0.0
    %1422 = vmatprep.mubr.f32.mxu0 0.0
    %1423 = vmatmul.mubr.f32.gmra.mrb[0].mxu0 %v1356
    %v1424 = vpop.f32.mrb[0].mxu0
    %v1425 = vadd.f32 0.0, %v1424
    %v1426 = vpop.f32.mrb[0].mxu0
    %1427 = vdwg.mxu0
    %v1428 = vadd.f32 %v1352, %v1425
    %v1429 = vmul.f32 %v1428, 0.5
    %v1430 = vtanh.pop %v1429
    %v1431 = vmul.f32 %v1430, 0.5
    %v1432 = vadd.f32 %v1431, 0.5
    %v1433 = vtanh.pop %v1428
    %v1434 = vmul.f32 %v1432, %v1345
    %1436 = vrot.lane.b32.xlu0 %v1433, 64
    %v1437 = vpop.permute.xlu0 %1436
    %v1439 = vmul.f32 %v1432, %v1437
    %1441 = vrot.lane.b32.xlu0 %v1439, 32
    %v1442 = vpop.permute.xlu0 %1441
    %v1444 = vadd.f32 %v1434, %v1442
    %v1445 = vtanh.pop %v1444
    %1447 = vrot.lane.b32.xlu0 %v1445, 64
    %v1448 = vpop.permute.xlu0 %1447
    %v1450 = vmul.f32 %v1432, %v1448
    %v1451 = vld [vmem:[%s480] sm:$0xff]
    %1453 = vrot.lane.b32.xlu0 %v1450, 32
    %v1454 = vpop.permute.xlu0 %1453
    %v1455 = vsel %vm275, %v1454, 0
    %1457 = vmatprep.subr.mxu0 0.0
    %1458 = vmatpush1.msra.mxu0 %v1098
    %1459 = vmatprep.subr.mxu0 0.0
    %1460 = vmatpush1.msra.mxu0 %v1099
    %1461 = vmatprep.subr.mxu0 0.0
    %1462 = vmatpush1.msra.mxu0 %v1100
    %1463 = vmatprep.subr.mxu0 0.0
    %1464 = vmatpush1.msra.mxu0 %v1101
    %1465 = vmatprep.subr.mxu0 0.0
    %1466 = vmatpush1.msra.mxu0 0.0
    %1467 = vmatprep.subr.mxu0 0.0
    %1468 = vmatpush1.msra.mxu0 0.0
    %1469 = vmatprep.subr.mxu0 0.0
    %1470 = vmatpush1.msra.mxu0 0.0
    %1471 = vmatprep.subr.mxu0 0.0
    %1472 = vmatpush1.msra.mxu0 0.0
    %1473 = vmatprep.subr.mxu0 0.0
    %1474 = vmatpush1.msra.mxu0 0.0
    %1475 = vmatprep.subr.mxu0 0.0
    %1476 = vmatpush1.msra.mxu0 0.0
    %1477 = vmatprep.subr.mxu0 0.0
    %1478 = vmatpush1.msra.mxu0 0.0
    %1479 = vmatprep.subr.mxu0 0.0
    %1480 = vmatpush1.msra.mxu0 0.0
    %1481 = vmatprep.subr.mxu0 0.0
    %1482 = vmatpush1.msra.mxu0 0.0
    %1483 = vmatprep.subr.mxu0 0.0
    %1484 = vmatpush1.msra.mxu0 0.0
    %1485 = vmatprep.subr.mxu0 0.0
    %1486 = vmatpush1.msra.mxu0 0.0
    %1487 = vmatprep.subr.mxu0 0.0
    %1488 = vmatpush1.msra.mxu0 0.0
    %1489 = vmatprep.subr.mxu0 0.0
    %1490 = vmatpush1.msra.mxu0 0.0
    %1491 = vmatprep.subr.mxu0 0.0
    %1492 = vmatpush1.msra.mxu0 0.0
    %1493 = vmatprep.subr.mxu0 0.0
    %1494 = vmatpush1.msra.mxu0 0.0
    %1495 = vmatprep.subr.mxu0 0.0
    %1496 = vmatpush1.msra.mxu0 0.0
    %1497 = vmatprep.subr.mxu0 0.0
    %1498 = vmatpush1.msra.mxu0 0.0
    %1499 = vmatprep.subr.mxu0 0.0
    %1500 = vmatpush1.msra.mxu0 0.0
    %1501 = vmatprep.subr.mxu0 0.0
    %1502 = vmatpush1.msra.mxu0 0.0
    %1503 = vmatprep.subr.mxu0 0.0
    %1504 = vmatpush1.msra.mxu0 0.0
    %1505 = vmatprep.subr.mxu0 0.0
    %1506 = vmatpush1.msra.mxu0 0.0
    %1507 = vmatprep.subr.mxu0 0.0
    %1508 = vmatpush1.msra.mxu0 0.0
    %1509 = vmatprep.subr.mxu0 0.0
    %1510 = vmatpush1.msra.mxu0 0.0
    %1511 = vmatprep.subr.mxu0 0.0
    %1512 = vmatpush1.msra.mxu0 0.0
    %1513 = vmatprep.subr.mxu0 0.0
    %1514 = vmatpush1.msra.mxu0 0.0
    %1515 = vmatprep.subr.mxu0 0.0
    %1516 = vmatpush1.msra.mxu0 0.0
    %1517 = vmatprep.subr.mxu0 0.0
    %1518 = vmatpush1.msra.mxu0 0.0
    %1519 = vmatprep.subr.mxu0 0.0
    %1520 = vmatpush1.msra.mxu0 0.0
    %1521 = vmatprep.mubr.f32.mxu0 0.0
    %1522 = vmatmul.mubr.f32.gmra.mrb[0].mxu0 %v1455
    %v1523 = vpop.f32.mrb[0].mxu0
    %v1524 = vadd.f32 0.0, %v1523
    %v1525 = vpop.f32.mrb[0].mxu0
    %1526 = vdwg.mxu0
    %v1527 = vadd.f32 %v1451, %v1524
    %v1528 = vmul.f32 %v1527, 0.5
    %v1529 = vtanh.pop %v1528
    %v1530 = vmul.f32 %v1529, 0.5
    %v1531 = vadd.f32 %v1530, 0.5
    %v1532 = vtanh.pop %v1527
    %v1533 = vmul.f32 %v1531, %v1444
    %1535 = vrot.lane.b32.xlu0 %v1532, 64
    %v1536 = vpop.permute.xlu0 %1535
    %v1538 = vmul.f32 %v1531, %v1536
    %1540 = vrot.lane.b32.xlu0 %v1538, 32
    %v1541 = vpop.permute.xlu0 %1540
    %v1543 = vadd.f32 %v1533, %v1541
    %v1544 = vtanh.pop %v1543
    %1546 = vrot.lane.b32.xlu0 %v1544, 64
    %v1547 = vpop.permute.xlu0 %1546
    %v1549 = vmul.f32 %v1531, %v1547
    %v1550 = vld [vmem:[%s583] sm:$0xff]
    %1552 = vrot.lane.b32.xlu0 %v1549, 32
    %v1553 = vpop.permute.xlu0 %1552
    %v1554 = vsel %vm275, %v1553, 0
    %1556 = vmatprep.subr.mxu0 0.0
    %1557 = vmatpush1.msra.mxu0 %v1098
    %1558 = vmatprep.subr.mxu0 0.0
    %1559 = vmatpush1.msra.mxu0 %v1099
    %1560 = vmatprep.subr.mxu0 0.0
    %1561 = vmatpush1.msra.mxu0 %v1100
    %1562 = vmatprep.subr.mxu0 0.0
    %1563 = vmatpush1.msra.mxu0 %v1101
    %1564 = vmatprep.subr.mxu0 0.0
    %1565 = vmatpush1.msra.mxu0 0.0
    %1566 = vmatprep.subr.mxu0 0.0
    %1567 = vmatpush1.msra.mxu0 0.0
    %1568 = vmatprep.subr.mxu0 0.0
    %1569 = vmatpush1.msra.mxu0 0.0
    %1570 = vmatprep.subr.mxu0 0.0
    %1571 = vmatpush1.msra.mxu0 0.0
    %1572 = vmatprep.subr.mxu0 0.0
    %1573 = vmatpush1.msra.mxu0 0.0
    %1574 = vmatprep.subr.mxu0 0.0
    %1575 = vmatpush1.msra.mxu0 0.0
    %1576 = vmatprep.subr.mxu0 0.0
    %1577 = vmatpush1.msra.mxu0 0.0
    %1578 = vmatprep.subr.mxu0 0.0
    %1579 = vmatpush1.msra.mxu0 0.0
    %1580 = vmatprep.subr.mxu0 0.0
    %1581 = vmatpush1.msra.mxu0 0.0
    %1582 = vmatprep.subr.mxu0 0.0
    %1583 = vmatpush1.msra.mxu0 0.0
    %1584 = vmatprep.subr.mxu0 0.0
    %1585 = vmatpush1.msra.mxu0 0.0
    %1586 = vmatprep.subr.mxu0 0.0
    %1587 = vmatpush1.msra.mxu0 0.0
    %1588 = vmatprep.subr.mxu0 0.0
    %1589 = vmatpush1.msra.mxu0 0.0
    %1590 = vmatprep.subr.mxu0 0.0
    %1591 = vmatpush1.msra.mxu0 0.0
    %1592 = vmatprep.subr.mxu0 0.0
    %1593 = vmatpush1.msra.mxu0 0.0
    %1594 = vmatprep.subr.mxu0 0.0
    %1595 = vmatpush1.msra.mxu0 0.0
    %1596 = vmatprep.subr.mxu0 0.0
    %1597 = vmatpush1.msra.mxu0 0.0
    %1598 = vmatprep.subr.mxu0 0.0
    %1599 = vmatpush1.msra.mxu0 0.0
    %1600 = vmatprep.subr.mxu0 0.0
    %1601 = vmatpush1.msra.mxu0 0.0
    %1602 = vmatprep.subr.mxu0 0.0
    %1603 = vmatpush1.msra.mxu0 0.0
    %1604 = vmatprep.subr.mxu0 0.0
    %1605 = vmatpush1.msra.mxu0 0.0
    %1606 = vmatprep.subr.mxu0 0.0
    %1607 = vmatpush1.msra.mxu0 0.0
    %1608 = vmatprep.subr.mxu0 0.0
    %1609 = vmatpush1.msra.mxu0 0.0
    %1610 = vmatprep.subr.mxu0 0.0
    %1611 = vmatpush1.msra.mxu0 0.0
    %1612 = vmatprep.subr.mxu0 0.0
    %1613 = vmatpush1.msra.mxu0 0.0
    %1614 = vmatprep.subr.mxu0 0.0
    %1615 = vmatpush1.msra.mxu0 0.0
    %1616 = vmatprep.subr.mxu0 0.0
    %1617 = vmatpush1.msra.mxu0 0.0
    %1618 = vmatprep.subr.mxu0 0.0
    %1619 = vmatpush1.msra.mxu0 0.0
    %1620 = vmatprep.mubr.f32.mxu0 0.0
    %1621 = vmatmul.mubr.f32.gmra.mrb[0].mxu0 %v1554
    %v1622 = vpop.f32.mrb[0].mxu0
    %v1623 = vadd.f32 0.0, %v1622
    %v1624 = vpop.f32.mrb[0].mxu0
    %1625 = vdwg.mxu0
    %v1626 = vadd.f32 %v1550, %v1623
    %v1627 = vmul.f32 %v1626, 0.5
    %v1628 = vtanh.pop %v1627
    %v1629 = vmul.f32 %v1628, 0.5
    %v1630 = vadd.f32 %v1629, 0.5
    %v1631 = vtanh.pop %v1626
    %v1632 = vmul.f32 %v1630, %v1543
    %1634 = vrot.lane.b32.xlu0 %v1631, 64
    %v1635 = vpop.permute.xlu0 %1634
    %v1637 = vmul.f32 %v1630, %v1635
    %1639 = vrot.lane.b32.xlu0 %v1637, 32
    %v1640 = vpop.permute.xlu0 %1639
    %v1642 = vadd.f32 %v1632, %v1640
    %v1643 = vtanh.pop %v1642
    %1645 = vrot.lane.b32.xlu0 %v1643, 64
    %v1646 = vpop.permute.xlu0 %1645
    %v1648 = vmul.f32 %v1630, %v1646
    %v1649 = vld [vmem:[%s686] sm:$0xff]
    %1651 = vrot.lane.b32.xlu0 %v1648, 32
    %v1652 = vpop.permute.xlu0 %1651
    %v1653 = vsel %vm275, %v1652, 0
    %1655 = vmatprep.subr.mxu0 0.0
    %1656 = vmatpush1.msra.mxu0 %v1098
    %1657 = vmatprep.subr.mxu0 0.0
    %1658 = vmatpush1.msra.mxu0 %v1099
    %1659 = vmatprep.subr.mxu0 0.0
    %1660 = vmatpush1.msra.mxu0 %v1100
    %1661 = vmatprep.subr.mxu0 0.0
    %1662 = vmatpush1.msra.mxu0 %v1101
    %1663 = vmatprep.subr.mxu0 0.0
    %1664 = vmatpush1.msra.mxu0 0.0
    %1665 = vmatprep.subr.mxu0 0.0
    %1666 = vmatpush1.msra.mxu0 0.0
    %1667 = vmatprep.subr.mxu0 0.0
    %1668 = vmatpush1.msra.mxu0 0.0
    %1669 = vmatprep.subr.mxu0 0.0
    %1670 = vmatpush1.msra.mxu0 0.0
    %1671 = vmatprep.subr.mxu0 0.0
    %1672 = vmatpush1.msra.mxu0 0.0
    %1673 = vmatprep.subr.mxu0 0.0
    %1674 = vmatpush1.msra.mxu0 0.0
    %1675 = vmatprep.subr.mxu0 0.0
    %1676 = vmatpush1.msra.mxu0 0.0
    %1677 = vmatprep.subr.mxu0 0.0
    %1678 = vmatpush1.msra.mxu0 0.0
    %1679 = vmatprep.subr.mxu0 0.0
    %1680 = vmatpush1.msra.mxu0 0.0
    %1681 = vmatprep.subr.mxu0 0.0
    %1682 = vmatpush1.msra.mxu0 0.0
    %1683 = vmatprep.subr.mxu0 0.0
    %1684 = vmatpush1.msra.mxu0 0.0
    %1685 = vmatprep.subr.mxu0 0.0
    %1686 = vmatpush1.msra.mxu0 0.0
    %1687 = vmatprep.subr.mxu0 0.0
    %1688 = vmatpush1.msra.mxu0 0.0
    %1689 = vmatprep.subr.mxu0 0.0
    %1690 = vmatpush1.msra.mxu0 0.0
    %1691 = vmatprep.subr.mxu0 0.0
    %1692 = vmatpush1.msra.mxu0 0.0
    %1693 = vmatprep.subr.mxu0 0.0
    %1694 = vmatpush1.msra.mxu0 0.0
    %1695 = vmatprep.subr.mxu0 0.0
    %1696 = vmatpush1.msra.mxu0 0.0
    %1697 = vmatprep.subr.mxu0 0.0
    %1698 = vmatpush1.msra.mxu0 0.0
    %1699 = vmatprep.subr.mxu0 0.0
    %1700 = vmatpush1.msra.mxu0 0.0
    %1701 = vmatprep.subr.mxu0 0.0
    %1702 = vmatpush1.msra.mxu0 0.0
    %1703 = vmatprep.subr.mxu0 0.0
    %1704 = vmatpush1.msra.mxu0 0.0
    %1705 = vmatprep.subr.mxu0 0.0
    %1706 = vmatpush1.msra.mxu0 0.0
    %1707 = vmatprep.subr.mxu0 0.0
    %1708 = vmatpush1.msra.mxu0 0.0
    %1709 = vmatprep.subr.mxu0 0.0
    %1710 = vmatpush1.msra.mxu0 0.0
    %1711 = vmatprep.subr.mxu0 0.0
    %1712 = vmatpush1.msra.mxu0 0.0
    %1713 = vmatprep.subr.mxu0 0.0
    %1714 = vmatpush1.msra.mxu0 0.0
    %1715 = vmatprep.subr.mxu0 0.0
    %1716 = vmatpush1.msra.mxu0 0.0
    %1717 = vmatprep.subr.mxu0 0.0
    %1718 = vmatpush1.msra.mxu0 0.0
    %1719 = vmatprep.mubr.f32.mxu0 0.0
    %1720 = vmatmul.mubr.f32.gmra.mrb[0].mxu0 %v1653
    %v1721 = vpop.f32.mrb[0].mxu0
    %v1722 = vadd.f32 0.0, %v1721
    %v1723 = vpop.f32.mrb[0].mxu0
    %1724 = vdwg.mxu0
    %v1725 = vadd.f32 %v1649, %v1722
    %v1726 = vmul.f32 %v1725, 0.5
    %v1727 = vtanh.pop %v1726
    %v1728 = vmul.f32 %v1727, 0.5
    %v1729 = vadd.f32 %v1728, 0.5
    %v1730 = vtanh.pop %v1725
    %v1731 = vmul.f32 %v1729, %v1642
    %1733 = vrot.lane.b32.xlu0 %v1730, 64
    %v1734 = vpop.permute.xlu0 %1733
    %v1736 = vmul.f32 %v1729, %v1734
    %1738 = vrot.lane.b32.xlu0 %v1736, 32
    %v1739 = vpop.permute.xlu0 %1738
    %v1741 = vadd.f32 %v1731, %v1739
    %v1742 = vtanh.pop %v1741
    %1744 = vrot.lane.b32.xlu0 %v1742, 64
    %v1745 = vpop.permute.xlu0 %1744
    %v1747 = vmul.f32 %v1729, %v1745
    %v1748 = vld [vmem:[%s789] sm:$0xff]
    %1750 = vrot.lane.b32.xlu0 %v1747, 32
    %v1751 = vpop.permute.xlu0 %1750
    %v1752 = vsel %vm275, %v1751, 0
    %1754 = vmatprep.subr.mxu0 0.0
    %1755 = vmatpush1.msra.mxu0 %v1098
    %1756 = vmatprep.subr.mxu0 0.0
    %1757 = vmatpush1.msra.mxu0 %v1099
    %1758 = vmatprep.subr.mxu0 0.0
    %1759 = vmatpush1.msra.mxu0 %v1100
    %1760 = vmatprep.subr.mxu0 0.0
    %1761 = vmatpush1.msra.mxu0 %v1101
    %1762 = vmatprep.subr.mxu0 0.0
    %1763 = vmatpush1.msra.mxu0 0.0
    %1764 = vmatprep.subr.mxu0 0.0
    %1765 = vmatpush1.msra.mxu0 0.0
    %1766 = vmatprep.subr.mxu0 0.0
    %1767 = vmatpush1.msra.mxu0 0.0
    %1768 = vmatprep.subr.mxu0 0.0
    %1769 = vmatpush1.msra.mxu0 0.0
    %1770 = vmatprep.subr.mxu0 0.0
    %1771 = vmatpush1.msra.mxu0 0.0
    %1772 = vmatprep.subr.mxu0 0.0
    %1773 = vmatpush1.msra.mxu0 0.0
    %1774 = vmatprep.subr.mxu0 0.0
    %1775 = vmatpush1.msra.mxu0 0.0
    %1776 = vmatprep.subr.mxu0 0.0
    %1777 = vmatpush1.msra.mxu0 0.0
    %1778 = vmatprep.subr.mxu0 0.0
    %1779 = vmatpush1.msra.mxu0 0.0
    %1780 = vmatprep.subr.mxu0 0.0
    %1781 = vmatpush1.msra.mxu0 0.0
    %1782 = vmatprep.subr.mxu0 0.0
    %1783 = vmatpush1.msra.mxu0 0.0
    %1784 = vmatprep.subr.mxu0 0.0
    %1785 = vmatpush1.msra.mxu0 0.0
    %1786 = vmatprep.subr.mxu0 0.0
    %1787 = vmatpush1.msra.mxu0 0.0
    %1788 = vmatprep.subr.mxu0 0.0
    %1789 = vmatpush1.msra.mxu0 0.0
    %1790 = vmatprep.subr.mxu0 0.0
    %1791 = vmatpush1.msra.mxu0 0.0
    %1792 = vmatprep.subr.mxu0 0.0
    %1793 = vmatpush1.msra.mxu0 0.0
    %1794 = vmatprep.subr.mxu0 0.0
    %1795 = vmatpush1.msra.mxu0 0.0
    %1796 = vmatprep.subr.mxu0 0.0
    %1797 = vmatpush1.msra.mxu0 0.0
    %1798 = vmatprep.subr.mxu0 0.0
    %1799 = vmatpush1.msra.mxu0 0.0
    %1800 = vmatprep.subr.mxu0 0.0
    %1801 = vmatpush1.msra.mxu0 0.0
    %1802 = vmatprep.subr.mxu0 0.0
    %1803 = vmatpush1.msra.mxu0 0.0
    %1804 = vmatprep.subr.mxu0 0.0
    %1805 = vmatpush1.msra.mxu0 0.0
    %1806 = vmatprep.subr.mxu0 0.0
    %1807 = vmatpush1.msra.mxu0 0.0
    %1808 = vmatprep.subr.mxu0 0.0
    %1809 = vmatpush1.msra.mxu0 0.0
    %1810 = vmatprep.subr.mxu0 0.0
    %1811 = vmatpush1.msra.mxu0 0.0
    %1812 = vmatprep.subr.mxu0 0.0
    %1813 = vmatpush1.msra.mxu0 0.0
    %1814 = vmatprep.subr.mxu0 0.0
    %1815 = vmatpush1.msra.mxu0 0.0
    %1816 = vmatprep.subr.mxu0 0.0
    %1817 = vmatpush1.msra.mxu0 0.0
    %1818 = vmatprep.mubr.f32.mxu0 0.0
    %1819 = vmatmul.mubr.f32.gmra.mrb[0].mxu0 %v1752
    %v1820 = vpop.f32.mrb[0].mxu0
    %v1821 = vadd.f32 0.0, %v1820
    %v1822 = vpop.f32.mrb[0].mxu0
    %1823 = vdwg.mxu0
    %v1824 = vadd.f32 %v1748, %v1821
    %v1825 = vmul.f32 %v1824, 0.5
    %v1826 = vtanh.pop %v1825
    %v1827 = vmul.f32 %v1826, 0.5
    %v1828 = vadd.f32 %v1827, 0.5
    %v1829 = vtanh.pop %v1824
    %v1830 = vmul.f32 %v1828, %v1741
    %1832 = vrot.lane.b32.xlu0 %v1829, 64
    %v1833 = vpop.permute.xlu0 %1832
    %v1835 = vmul.f32 %v1828, %v1833
    %1837 = vrot.lane.b32.xlu0 %v1835, 32
    %v1838 = vpop.permute.xlu0 %1837
    %v1840 = vadd.f32 %v1830, %v1838
    %v1841 = vtanh.pop %v1840
    %1843 = vrot.lane.b32.xlu0 %v1841, 64
    %v1844 = vpop.permute.xlu0 %1843
    %v1846 = vmul.f32 %v1828, %v1844
    %v1847 = vld [vmem:[%s892] sm:$0xff]
    %1849 = vrot.lane.b32.xlu0 %v1846, 32
    %v1850 = vpop.permute.xlu0 %1849
    %v1851 = vsel %vm275, %v1850, 0
    %1853 = vmatprep.subr.mxu0 0.0
    %1854 = vmatpush1.msra.mxu0 %v1098
    %1855 = vmatprep.subr.mxu0 0.0
    %1856 = vmatpush1.msra.mxu0 %v1099
    %1857 = vmatprep.subr.mxu0 0.0
    %1858 = vmatpush1.msra.mxu0 %v1100
    %1859 = vmatprep.subr.mxu0 0.0
    %1860 = vmatpush1.msra.mxu0 %v1101
    %1861 = vmatprep.subr.mxu0 0.0
    %1862 = vmatpush1.msra.mxu0 0.0
    %1863 = vmatprep.subr.mxu0 0.0
    %1864 = vmatpush1.msra.mxu0 0.0
    %1865 = vmatprep.subr.mxu0 0.0
    %1866 = vmatpush1.msra.mxu0 0.0
    %1867 = vmatprep.subr.mxu0 0.0
    %1868 = vmatpush1.msra.mxu0 0.0
    %1869 = vmatprep.subr.mxu0 0.0
    %1870 = vmatpush1.msra.mxu0 0.0
    %1871 = vmatprep.subr.mxu0 0.0
    %1872 = vmatpush1.msra.mxu0 0.0
    %1873 = vmatprep.subr.mxu0 0.0
    %1874 = vmatpush1.msra.mxu0 0.0
    %1875 = vmatprep.subr.mxu0 0.0
    %1876 = vmatpush1.msra.mxu0 0.0
    %1877 = vmatprep.subr.mxu0 0.0
    %1878 = vmatpush1.msra.mxu0 0.0
    %1879 = vmatprep.subr.mxu0 0.0
    %1880 = vmatpush1.msra.mxu0 0.0
    %1881 = vmatprep.subr.mxu0 0.0
    %1882 = vmatpush1.msra.mxu0 0.0
    %1883 = vmatprep.subr.mxu0 0.0
    %1884 = vmatpush1.msra.mxu0 0.0
    %1885 = vmatprep.subr.mxu0 0.0
    %1886 = vmatpush1.msra.mxu0 0.0
    %1887 = vmatprep.subr.mxu0 0.0
    %1888 = vmatpush1.msra.mxu0 0.0
    %1889 = vmatprep.subr.mxu0 0.0
    %1890 = vmatpush1.msra.mxu0 0.0
    %1891 = vmatprep.subr.mxu0 0.0
    %1892 = vmatpush1.msra.mxu0 0.0
    %1893 = vmatprep.subr.mxu0 0.0
    %1894 = vmatpush1.msra.mxu0 0.0
    %1895 = vmatprep.subr.mxu0 0.0
    %1896 = vmatpush1.msra.mxu0 0.0
    %1897 = vmatprep.subr.mxu0 0.0
    %1898 = vmatpush1.msra.mxu0 0.0
    %1899 = vmatprep.subr.mxu0 0.0
    %1900 = vmatpush1.msra.mxu0 0.0
    %1901 = vmatprep.subr.mxu0 0.0
    %1902 = vmatpush1.msra.mxu0 0.0
    %1903 = vmatprep.subr.mxu0 0.0
    %1904 = vmatpush1.msra.mxu0 0.0
    %1905 = vmatprep.subr.mxu0 0.0
    %1906 = vmatpush1.msra.mxu0 0.0
    %1907 = vmatprep.subr.mxu0 0.0
    %1908 = vmatpush1.msra.mxu0 0.0
    %1909 = vmatprep.subr.mxu0 0.0
    %1910 = vmatpush1.msra.mxu0 0.0
    %1911 = vmatprep.subr.mxu0 0.0
    %1912 = vmatpush1.msra.mxu0 0.0
    %1913 = vmatprep.subr.mxu0 0.0
    %1914 = vmatpush1.msra.mxu0 0.0
    %1915 = vmatprep.subr.mxu0 0.0
    %1916 = vmatpush1.msra.mxu0 0.0
    %1917 = vmatprep.mubr.f32.mxu0 0.0
    %1918 = vmatmul.mubr.f32.gmra.mrb[0].mxu0 %v1851
    %v1919 = vpop.f32.mrb[0].mxu0
    %v1920 = vadd.f32 0.0, %v1919
    %v1921 = vpop.f32.mrb[0].mxu0
    %1922 = vdwg.mxu0
    %v1923 = vadd.f32 %v1847, %v1920
    %v1924 = vmul.f32 %v1923, 0.5
    %v1925 = vtanh.pop %v1924
    %v1926 = vmul.f32 %v1925, 0.5
    %v1927 = vadd.f32 %v1926, 0.5
    %v1928 = vtanh.pop %v1923
    %v1929 = vmul.f32 %v1927, %v1840
    %1931 = vrot.lane.b32.xlu0 %v1928, 64
    %v1932 = vpop.permute.xlu0 %1931
    %v1934 = vmul.f32 %v1927, %v1932
    %1936 = vrot.lane.b32.xlu0 %v1934, 32
    %v1937 = vpop.permute.xlu0 %1936
    %v1939 = vadd.f32 %v1929, %v1937
    %v1940 = vtanh.pop %v1939
    %1942 = vrot.lane.b32.xlu0 %v1940, 64
    %v1943 = vpop.permute.xlu0 %1942
    %v1945 = vmul.f32 %v1927, %v1943
    %v1946 = vld [vmem:[%s995] sm:$0xff]
    %1948 = vrot.lane.b32.xlu0 %v1945, 32
    %v1949 = vpop.permute.xlu0 %1948
    %v1950 = vsel %vm275, %v1949, 0
    %1952 = vmatprep.subr.mxu0 0.0
    %1953 = vmatpush1.msra.mxu0 %v1098
    %1954 = vmatprep.subr.mxu0 0.0
    %1955 = vmatpush1.msra.mxu0 %v1099
    %1956 = vmatprep.subr.mxu0 0.0
    %1957 = vmatpush1.msra.mxu0 %v1100
    %1958 = vmatprep.subr.mxu0 0.0
    %1959 = vmatpush1.msra.mxu0 %v1101
    %1960 = vmatprep.subr.mxu0 0.0
    %1961 = vmatpush1.msra.mxu0 0.0
    %1962 = vmatprep.subr.mxu0 0.0
    %1963 = vmatpush1.msra.mxu0 0.0
    %1964 = vmatprep.subr.mxu0 0.0
    %1965 = vmatpush1.msra.mxu0 0.0
    %1966 = vmatprep.subr.mxu0 0.0
    %1967 = vmatpush1.msra.mxu0 0.0
    %1968 = vmatprep.subr.mxu0 0.0
    %1969 = vmatpush1.msra.mxu0 0.0
    %1970 = vmatprep.subr.mxu0 0.0
    %1971 = vmatpush1.msra.mxu0 0.0
    %1972 = vmatprep.subr.mxu0 0.0
    %1973 = vmatpush1.msra.mxu0 0.0
    %1974 = vmatprep.subr.mxu0 0.0
    %1975 = vmatpush1.msra.mxu0 0.0
    %1976 = vmatprep.subr.mxu0 0.0
    %1977 = vmatpush1.msra.mxu0 0.0
    %1978 = vmatprep.subr.mxu0 0.0
    %1979 = vmatpush1.msra.mxu0 0.0
    %1980 = vmatprep.subr.mxu0 0.0
    %1981 = vmatpush1.msra.mxu0 0.0
    %1982 = vmatprep.subr.mxu0 0.0
    %1983 = vmatpush1.msra.mxu0 0.0
    %1984 = vmatprep.subr.mxu0 0.0
    %1985 = vmatpush1.msra.mxu0 0.0
    %1986 = vmatprep.subr.mxu0 0.0
    %1987 = vmatpush1.msra.mxu0 0.0
    %1988 = vmatprep.subr.mxu0 0.0
    %1989 = vmatpush1.msra.mxu0 0.0
    %1990 = vmatprep.subr.mxu0 0.0
    %1991 = vmatpush1.msra.mxu0 0.0
    %1992 = vmatprep.subr.mxu0 0.0
    %1993 = vmatpush1.msra.mxu0 0.0
    %1994 = vmatprep.subr.mxu0 0.0
    %1995 = vmatpush1.msra.mxu0 0.0
    %1996 = vmatprep.subr.mxu0 0.0
    %1997 = vmatpush1.msra.mxu0 0.0
    %1998 = vmatprep.subr.mxu0 0.0
    %1999 = vmatpush1.msra.mxu0 0.0
    %2000 = vmatprep.subr.mxu0 0.0
    %2001 = vmatpush1.msra.mxu0 0.0
    %2002 = vmatprep.subr.mxu0 0.0
    %2003 = vmatpush1.msra.mxu0 0.0
    %2004 = vmatprep.subr.mxu0 0.0
    %2005 = vmatpush1.msra.mxu0 0.0
    %2006 = vmatprep.subr.mxu0 0.0
    %2007 = vmatpush1.msra.mxu0 0.0
    %2008 = vmatprep.subr.mxu0 0.0
    %2009 = vmatpush1.msra.mxu0 0.0
    %2010 = vmatprep.subr.mxu0 0.0
    %2011 = vmatpush1.msra.mxu0 0.0
    %2012 = vmatprep.subr.mxu0 0.0
    %2013 = vmatpush1.msra.mxu0 0.0
    %2014 = vmatprep.subr.mxu0 0.0
    %2015 = vmatpush1.msra.mxu0 0.0
    %2016 = vmatprep.mubr.f32.mxu0 0.0
    %2017 = vmatmul.mubr.f32.gmra.mrb[0].mxu0 %v1950
    %v2018 = vpop.f32.mrb[0].mxu0
    %v2019 = vadd.f32 0.0, %v2018
    %v2020 = vpop.f32.mrb[0].mxu0
    %2021 = vdwg.mxu0
    %v2022 = vadd.f32 %v1946, %v2019
    %v2023 = vmul.f32 %v2022, 0.5
    %v2024 = vtanh.pop %v2023
    %v2025 = vmul.f32 %v2024, 0.5
    %v2026 = vadd.f32 %v2025, 0.5
    %v2027 = vtanh.pop %v2022
    %v2028 = vmul.f32 %v2026, %v1939
    %2030 = vrot.lane.b32.xlu0 %v2027, 64
    %v2031 = vpop.permute.xlu0 %2030
    %v2033 = vmul.f32 %v2026, %v2031
    %2035 = vrot.lane.b32.xlu0 %v2033, 32
    %v2036 = vpop.permute.xlu0 %2035
    %v2038 = vadd.f32 %v2028, %v2036
    %v2039 = vtanh.pop %v2038
    %2041 = vrot.lane.b32.xlu0 %v2039, 64
    %v2042 = vpop.permute.xlu0 %2041
    %v2044 = vmul.f32 %v2026, %v2042
    %v2045 = vld [vmem:[#allocation13] sm:$0xff]
    %v2046 = vld [vmem:[#allocation13 + $0x8] sm:$0xff]
    %v2047 = vld [vmem:[#allocation13 + $0x10] sm:$0xff]
    %v2048 = vld [vmem:[#allocation13 + $0x18] sm:$0xff]
    %v2049 = vld [vmem:[%s8] sm:$0x1]
    %v2051 = vlaneseq
    %v2052 = vshrl.u32 %v2051, 7
    %v2053 = vsub.s32 0, %v2052
    %v2054 = vrot.slane %v2049, %v2053
    %2057 = vrot.lane.b32.xlu0 %v2044, 32
    %v2058 = vpop.permute.xlu0 %2057
    %v2059 = vsel %vm275, %v2058, 0
    %2061 = vmatprep.subr.mxu0 0.0
    %2062 = vmatpush1.msra.mxu0 %v2045
    %2063 = vmatprep.subr.mxu0 0.0
    %2064 = vmatpush1.msra.mxu0 %v2046
    %2065 = vmatprep.subr.mxu0 0.0
    %2066 = vmatpush1.msra.mxu0 %v2047
    %2067 = vmatprep.subr.mxu0 0.0
    %2068 = vmatpush1.msra.mxu0 %v2048
    %2069 = vmatprep.subr.mxu0 0.0
    %2070 = vmatpush1.msra.mxu0 0.0
    %2071 = vmatprep.subr.mxu0 0.0
    %2072 = vmatpush1.msra.mxu0 0.0
    %2073 = vmatprep.subr.mxu0 0.0
    %2074 = vmatpush1.msra.mxu0 0.0
    %2075 = vmatprep.subr.mxu0 0.0
    %2076 = vmatpush1.msra.mxu0 0.0
    %2077 = vmatprep.subr.mxu0 0.0
    %2078 = vmatpush1.msra.mxu0 0.0
    %2079 = vmatprep.subr.mxu0 0.0
    %2080 = vmatpush1.msra.mxu0 0.0
    %2081 = vmatprep.subr.mxu0 0.0
    %2082 = vmatpush1.msra.mxu0 0.0
    %2083 = vmatprep.subr.mxu0 0.0
    %2084 = vmatpush1.msra.mxu0 0.0
    %2085 = vmatprep.subr.mxu0 0.0
    %2086 = vmatpush1.msra.mxu0 0.0
    %2087 = vmatprep.subr.mxu0 0.0
    %2088 = vmatpush1.msra.mxu0 0.0
    %2089 = vmatprep.subr.mxu0 0.0
    %2090 = vmatpush1.msra.mxu0 0.0
    %2091 = vmatprep.subr.mxu0 0.0
    %2092 = vmatpush1.msra.mxu0 0.0
    %2093 = vmatprep.subr.mxu0 0.0
    %2094 = vmatpush1.msra.mxu0 0.0
    %2095 = vmatprep.subr.mxu0 0.0
    %2096 = vmatpush1.msra.mxu0 0.0
    %2097 = vmatprep.subr.mxu0 0.0
    %2098 = vmatpush1.msra.mxu0 0.0
    %2099 = vmatprep.subr.mxu0 0.0
    %2100 = vmatpush1.msra.mxu0 0.0
    %2101 = vmatprep.subr.mxu0 0.0
    %2102 = vmatpush1.msra.mxu0 0.0
    %2103 = vmatprep.subr.mxu0 0.0
    %2104 = vmatpush1.msra.mxu0 0.0
    %2105 = vmatprep.subr.mxu0 0.0
    %2106 = vmatpush1.msra.mxu0 0.0
    %2107 = vmatprep.subr.mxu0 0.0
    %2108 = vmatpush1.msra.mxu0 0.0
    %2109 = vmatprep.subr.mxu0 0.0
    %2110 = vmatpush1.msra.mxu0 0.0
    %2111 = vmatprep.subr.mxu0 0.0
    %2112 = vmatpush1.msra.mxu0 0.0
    %2113 = vmatprep.subr.mxu0 0.0
    %2114 = vmatpush1.msra.mxu0 0.0
    %2115 = vmatprep.subr.mxu0 0.0
    %2116 = vmatpush1.msra.mxu0 0.0
    %2117 = vmatprep.subr.mxu0 0.0
    %2118 = vmatpush1.msra.mxu0 0.0
    %2119 = vmatprep.subr.mxu0 0.0
    %2120 = vmatpush1.msra.mxu0 0.0
    %2121 = vmatprep.subr.mxu0 0.0
    %2122 = vmatpush1.msra.mxu0 0.0
    %2123 = vmatprep.subr.mxu0 0.0
    %2124 = vmatpush1.msra.mxu0 0.0
    %2125 = vmatprep.mubr.f32.mxu0 0.0
    %2126 = vmatmul.mubr.f32.gmra.mrb[0].mxu0 %v2059
    %v2127 = vpop.f32.mrb[0].mxu0
    %v2128 = vadd.f32 %v2054, %v2127
    %v2129 = vpop.f32.mrb[0].mxu0
    %2130 = vdwg.mxu0
    %2131 = vst [vmem:[#allocation15] sm:$0xff] %v2128
    // Predicated region
    $region62: #{tpu_custom_call.1} parent=1 // pred_check
      _
    $region63: #{tpu_custom_call.1} parent=1 // pred_check_branch
      %2133 = sbr.rel (0) target = $region65
    $region64: #{tpu_custom_call.1} parent=1 // pred_region
      %s2135 = ssub.s32 128, 128
      %2136 = vsyncadd [#allocation6], %s2135
      %s2138 = sshll.u32 [#allocation15], 4
      %s2139 = int_to_ptr.vmem [resolvable:$true] %s2138
      %2141 = dma.vmem_to_hbm [thread:$0]  %s2139, 128, %s9, [#allocation6]
    $region65: #{tpu_custom_call.1} parent=1 // pred_fallthru
      _
    // Predicated region
    $region66: #{tpu_custom_call.1} parent=1 // pred_check
      _
    $region67: #{tpu_custom_call.1} parent=1 // pred_check_branch
      %2143 = sbr.rel (0) target = $region69
    $region68: #{tpu_custom_call.1} parent=1 // pred_region
      %2144 = dma.done [#allocation6], 128
    $region69: #{tpu_custom_call.1} parent=1 // pred_fallthru
      _
    %2145 = vsyncpa [#allocation5], 1
    %2146 = vsyncpa [#allocation8], 1
    %2147 = vsyncpa [#allocation11], 1
    %2148 = vsyncpa [#allocation14], 1
    %2149 = vsyncpa [#allocation6], 1

</llo_original>
